<compile_context>
chip_gen: v7x
topology: tpu7x:2x2x1
jax: 0.10.0
libtpu: 0.0.40
codegen_flags: <defaults>
</compile_context>

<pallas_src>
from functools import partial

import jax
import jax.numpy as jnp
from jax.experimental import pallas as pl
from jax.experimental.pallas import tpu as pltpu


def _round_up(n, m):
    return ((n + m - 1) // m) * m


def _choose_block_b(B):
    # >=2 grid steps when possible (v7x shards the "parallel" axis across 2 TCs),
    # 256-row multiples on bigger batches (v6e/v7x 256-wide MXU), 8-aligned sublanes.
    if B >= 2048:
        return 1024
    if B >= 512:
        return 256
    if B >= 16:
        return _round_up((B + 1) // 2, 8)
    return _round_up(max(B, 1), 8)


def classifier_kernel(x_ref, w1_ref, b1_ref, w2_ref, b2_ref, o_ref):
    # ---- hidden layer: x @ W1 + b1, ReLU (MXU f32-accum + VPU) ----
    x = x_ref[...].astype(jnp.bfloat16)            # cheap VPU cast, hidden under MXU
    h = jnp.dot(x, w1_ref[...], preferred_element_type=jnp.float32)
    h = jnp.maximum(h + b1_ref[...], 0.0)          # b1 is (1, Hp), broadcast over batch

    # ---- dropout: inference mode => identity ----

    # ---- output layer: h @ W2 + b2 (padded lanes carry -1e30 bias) ----
    logits = jnp.dot(h.astype(jnp.bfloat16), w2_ref[...],
                     preferred_element_type=jnp.float32)
    logits = logits + b2_ref[...]                  # b2 is (1, Op)

    # ---- numerically stable softmax over last dim ----
    m = jnp.max(logits, axis=-1, keepdims=True)
    e = jnp.exp(logits - m)
    denom = jnp.sum(e, axis=-1, keepdims=True)
    r = pl.reciprocal(denom, approx=True)          # EUP slot
    r = r * (2.0 - denom * r)                      # one Newton step -> near-exact norm
    o_ref[...] = (e * r).astype(o_ref.dtype)


def prepare_params(w1, b1, w2, b2):
    """One-time prep: pad feature dims to lane-dense multiples of 128, cast weights
    to bf16 (MXU-native).  Keep out of the per-call hot path."""
    D_IN, H = w1.shape
    O = w2.shape[1]
    h_p = _round_up(H, 128)
    o_p = _round_up(O, 128)
    NEG = jnp.float32(-1e30)  # masks padded output lanes out of the softmax

    w1_p = jnp.zeros((D_IN, h_p), jnp.bfloat16).at[:, :H].set(w1.astype(jnp.bfloat16))
    b1_p = jnp.zeros((1, h_p), jnp.float32).at[0, :H].set(b1.astype(jnp.float32))
    w2_p = jnp.zeros((h_p, o_p), jnp.bfloat16).at[:H, :O].set(w2.astype(jnp.bfloat16))
    b2_p = jnp.full((1, o_p), NEG, jnp.float32).at[0, :O].set(b2.astype(jnp.float32))
    return (w1_p, b1_p, w2_p, b2_p)


@partial(jax.jit, static_argnames=("num_classes", "block_b"))
def classifier_forward(x, w1_p, b1_p, w2_p, b2_p, *, num_classes, block_b=None):
    """x: (B, D_IN) f32 (raw, unpadded); params from prepare_params(); -> (B, num_classes) f32."""
    B, D_IN = x.shape
    h_p = w1_p.shape[1]
    o_p = w2_p.shape[1]

    if block_b is None:
        block_b = _choose_block_b(B)
    b_p = _round_up(B, block_b)
    if b_p != B:
        # zero rows -> finite garbage probabilities, sliced off below
        x = jnp.pad(x, ((0, b_p - B), (0, 0)))

    out_p = pl.pallas_call(
        classifier_kernel,
        out_shape=jax.ShapeDtypeStruct((b_p, o_p), jnp.float32),
        grid=(b_p // block_b,),
        in_specs=[
            pl.BlockSpec((block_b, D_IN), lambda i: (i, 0)),   # x tile: raw f32, pipelined
            pl.BlockSpec((D_IN, h_p), lambda i: (0, 0)),        # W1: resident bf16
            pl.BlockSpec((1, h_p), lambda i: (0, 0)),            # b1: resident f32
            pl.BlockSpec((h_p, o_p), lambda i: (0, 0)),          # W2: resident bf16
            pl.BlockSpec((1, o_p), lambda i: (0, 0)),            # b2: resident f32 (-1e30 pad)
        ],
        out_specs=pl.BlockSpec((block_b, o_p), lambda i: (i, 0)),
        compiler_params=pltpu.CompilerParams(
            dimension_semantics=("parallel",)),
    )(x, w1_p, b1_p, w2_p, b2_p)

    return out_p[:B, :num_classes]


if __name__ == "__main__":
    # Real ClassifierModule default dims: 784 -> 100 -> 10.  Batch 256 gives two
    # grid steps (exercises pipelining + the parallel batch axis) while staying small.
    B, D_IN, H, D_OUT = 256, 784, 100, 10

    key = jax.random.PRNGKey(0)
    kx, kw1, kb1, kw2, kb2 = jax.random.split(key, 5)

    x = jax.random.normal(kx, (B, D_IN), dtype=jnp.float32)

    # Deterministic "Linear" parameters (Kaiming-uniform-ish scale, seeded).
    lim1 = 1.0 / (D_IN ** 0.5)
    w1 = jax.random.uniform(kw1, (D_IN, H), jnp.float32, -lim1, lim1)
    b1 = jax.random.uniform(kb1, (H,), jnp.float32, -lim1, lim1)
    lim2 = 1.0 / (H ** 0.5)
    w2 = jax.random.uniform(kw2, (H, D_OUT), jnp.float32, -lim2, lim2)
    b2 = jax.random.uniform(kb2, (D_OUT,), jnp.float32, -lim2, lim2)

    # One-time parameter prep (padding + bf16 cast) hoisted out of the hot path.
    params = prepare_params(w1, b1, w2, b2)
    params = jax.block_until_ready(params)

    out = classifier_forward(x, *params, num_classes=D_OUT)
    out = jax.block_until_ready(out)

    # Pure-JAX f32 reference (same semantics as PyTorch eval-mode forward).
    h_ref = jnp.maximum(x @ w1 + b1[None, :], 0.0)
    ref = jax.nn.softmax(h_ref @ w2 + b2[None, :], axis=-1)

    assert out.shape == (B, D_OUT)
    # bf16 matmul operands => looser tolerance than pure-f32.
    assert jnp.allclose(out, ref, atol=3e-2, rtol=3e-2), float(jnp.max(jnp.abs(out - ref)))
    # Newton-refined reciprocal => rows sum to 1 tightly.
    assert jnp.allclose(jnp.sum(out, axis=-1), 1.0, atol=2e-3)
    # Predicted classes should match the reference.
    assert jnp.mean((jnp.argmax(out, -1) == jnp.argmax(ref, -1)).astype(jnp.float32)) > 0.99

    print("KERNEL_OK")
</pallas_src>

<mosaic_0001>
module attributes {stable_mosaic.version = 11 : i64} {
  func.func @classifier_kernel(%arg0: i32, %arg1: memref<128x784xf32, #tpu.memory_space<vmem>>, %arg2: memref<784x128xbf16, #tpu.memory_space<vmem>>, %arg3: memref<1x128xf32, #tpu.memory_space<vmem>>, %arg4: memref<128x128xbf16, #tpu.memory_space<vmem>>, %arg5: memref<1x128xf32, #tpu.memory_space<vmem>>, %arg6: memref<128x128xf32, #tpu.memory_space<vmem>>) attributes {dimension_semantics = [#tpu.dimension_semantics<parallel>], iteration_bounds = array<i64: 2>, scalar_prefetch = 0 : i64, scratch_operands = 0 : i64, tpu.core_type = #tpu.core_type<tc>, window_params = [{transform_indices = @transform_0, window_bounds = array<i64: 128, 784>}, {pipeline_mode = #tpu.pipeline_mode<synchronous>, transform_indices = @transform_1, window_bounds = array<i64: 784, 128>}, {pipeline_mode = #tpu.pipeline_mode<synchronous>, transform_indices = @transform_2, window_bounds = array<i64: 1, 128>}, {pipeline_mode = #tpu.pipeline_mode<synchronous>, transform_indices = @transform_3, window_bounds = array<i64: 128, 128>}, {pipeline_mode = #tpu.pipeline_mode<synchronous>, transform_indices = @transform_4, window_bounds = array<i64: 1, 128>}, {transform_indices = @transform_5, window_bounds = array<i64: 128, 128>}]} {
    %c0 = arith.constant 0 : index
    %c0_0 = arith.constant 0 : index
    %0 = vector.load %arg1[%c0, %c0_0] : memref<128x784xf32, #tpu.memory_space<vmem>>, vector<128x784xf32>
    %1 = arith.truncf %0 : vector<128x784xf32> to vector<128x784xbf16>
    %c0_1 = arith.constant 0 : index
    %c0_2 = arith.constant 0 : index
    %2 = vector.load %arg2[%c0_1, %c0_2] : memref<784x128xbf16, #tpu.memory_space<vmem>>, vector<784x128xbf16>
    %cst = arith.constant dense<0.000000e+00> : vector<128x128xf32>
    %3 = tpu.matmul %1, %2, %cst {dimension_numbers = #tpu.dot_dimension_numbers<[1], [0], [0], [1], [0, 0, 1, 1], [], []>} : vector<128x784xbf16>, vector<784x128xbf16>, vector<128x128xf32> -> vector<128x128xf32>
    %c0_3 = arith.constant 0 : index
    %c0_4 = arith.constant 0 : index
    %4 = vector.load %arg3[%c0_3, %c0_4] : memref<1x128xf32, #tpu.memory_space<vmem>>, vector<1x128xf32>
    %5 = vector.broadcast %4 : vector<1x128xf32> to vector<128x128xf32>
    %6 = arith.addf %3, %5 : vector<128x128xf32>
    %cst_5 = arith.constant 0.000000e+00 : f32
    %7 = vector.broadcast %cst_5 : f32 to vector<128x128xf32>
    %8 = arith.maximumf %6, %7 : vector<128x128xf32>
    %9 = arith.truncf %8 : vector<128x128xf32> to vector<128x128xbf16>
    %c0_6 = arith.constant 0 : index
    %c0_7 = arith.constant 0 : index
    %10 = vector.load %arg4[%c0_6, %c0_7] : memref<128x128xbf16, #tpu.memory_space<vmem>>, vector<128x128xbf16>
    %cst_8 = arith.constant dense<0.000000e+00> : vector<128x128xf32>
    %11 = tpu.matmul %9, %10, %cst_8 {dimension_numbers = #tpu.dot_dimension_numbers<[1], [0], [0], [1], [0, 0, 1, 1], [], []>} : vector<128x128xbf16>, vector<128x128xbf16>, vector<128x128xf32> -> vector<128x128xf32>
    %c0_9 = arith.constant 0 : index
    %c0_10 = arith.constant 0 : index
    %12 = vector.load %arg5[%c0_9, %c0_10] : memref<1x128xf32, #tpu.memory_space<vmem>>, vector<1x128xf32>
    %13 = vector.broadcast %12 : vector<1x128xf32> to vector<128x128xf32>
    %14 = arith.addf %11, %13 : vector<128x128xf32>
    %cst_11 = arith.constant dense<0xFF800000> : vector<128xf32>
    %15 = vector.multi_reduction <maximumf>, %14, %cst_11 [1] : vector<128x128xf32> to vector<128xf32>
    %16 = vector.shape_cast %15 : vector<128xf32> to vector<128x1xf32>
    %17 = vector.broadcast %16 : vector<128x1xf32> to vector<128x128xf32>
    %18 = arith.subf %14, %17 : vector<128x128xf32>
    %19 = math.exp %18 : vector<128x128xf32>
    %cst_12 = arith.constant dense<0.000000e+00> : vector<128xf32>
    %20 = vector.multi_reduction <add>, %19, %cst_12 [1] : vector<128x128xf32> to vector<128xf32>
    %21 = vector.shape_cast %20 : vector<128xf32> to vector<128x1xf32>
    %22 = tpu.reciprocal %21 {approx = true} : vector<128x1xf32> -> vector<128x1xf32>
    %23 = arith.mulf %21, %22 : vector<128x1xf32>
    %cst_13 = arith.constant 2.000000e+00 : f32
    %24 = vector.broadcast %cst_13 : f32 to vector<128x1xf32>
    %25 = arith.subf %24, %23 : vector<128x1xf32>
    %26 = arith.mulf %22, %25 : vector<128x1xf32>
    %27 = vector.broadcast %26 : vector<128x1xf32> to vector<128x128xf32>
    %28 = arith.mulf %19, %27 : vector<128x128xf32>
    %c0_14 = arith.constant 0 : index
    %c0_15 = arith.constant 0 : index
    %29 = vector.load %arg6[%c0_14, %c0_15] : memref<128x128xf32, #tpu.memory_space<vmem>>, vector<128x128xf32>
    tpu.vector_store %arg6[%c0_14, %c0_15], %28 {strides = array<i32>} : memref<128x128xf32, #tpu.memory_space<vmem>>, vector<128x128xf32>,
    return
  }
  func.func @transform_0(%arg0: i32) -> (i32, i32) {
    %c0_i32 = arith.constant 0 : i32
    %c0_i32_0 = arith.constant 0 : i32
    return %arg0, %c0_i32 : i32, i32
  }
  func.func @transform_1(%arg0: i32) -> (i32, i32) {
    %c0_i32 = arith.constant 0 : i32
    %c0_i32_0 = arith.constant 0 : i32
    %c0_i32_1 = arith.constant 0 : i32
    return %c0_i32, %c0_i32_0 : i32, i32
  }
  func.func @transform_2(%arg0: i32) -> (i32, i32) {
    %c0_i32 = arith.constant 0 : i32
    %c0_i32_0 = arith.constant 0 : i32
    %c0_i32_1 = arith.constant 0 : i32
    return %c0_i32, %c0_i32_0 : i32, i32
  }
  func.func @transform_3(%arg0: i32) -> (i32, i32) {
    %c0_i32 = arith.constant 0 : i32
    %c0_i32_0 = arith.constant 0 : i32
    %c0_i32_1 = arith.constant 0 : i32
    return %c0_i32, %c0_i32_0 : i32, i32
  }
  func.func @transform_4(%arg0: i32) -> (i32, i32) {
    %c0_i32 = arith.constant 0 : i32
    %c0_i32_0 = arith.constant 0 : i32
    %c0_i32_1 = arith.constant 0 : i32
    return %c0_i32, %c0_i32_0 : i32, i32
  }
  func.func @transform_5(%arg0: i32) -> (i32, i32) {
    %c0_i32 = arith.constant 0 : i32
    %c0_i32_0 = arith.constant 0 : i32
    return %arg0, %c0_i32 : i32, i32
  }
}

</mosaic_0001>

<llo_original>
// kernel: classifier_forward.1
$region0: #{classifier_forward.1}
  #allocation0 [shape = 'u32[]', space=smem, size = 0x4, offset = 0x4, fixed_abs, tag = 'smem constant byte address 0x4 - core index']
  #allocation1 [shape = 'u32[144,128]{1,0:T(1,128)}', space=vmem, size = 0x12000, scoped, tag = 'internal scratch']
  %s0 = inlined_call_operand.vmem [shape: f32[256,784], index: 0, kind: input, shape index: {}]
  %s1 = inlined_call_operand.vmem [shape: bf16[784,128], index: 1, kind: input, shape index: {}]
  %s2 = inlined_call_operand.vmem [shape: f32[1,128], index: 2, kind: input, shape index: {}]
  %s3 = inlined_call_operand.vmem [shape: bf16[128,128], index: 3, kind: input, shape index: {}]
  %s4 = inlined_call_operand.vmem [shape: f32[1,128], index: 4, kind: input, shape index: {}]
  %s5 = inlined_call_operand.vmem [shape: f32[256,128], index: 5, kind: output, shape index: {}]
  %s6 = sld [smem:[#allocation0]]
  $region53: #{classifier_forward.1} parent=0
    _
  %s8 = ssub.s32 1, %s6
  %s9 = scalar_select 0, %s8, %s6
  loop: start=0, step=1, limit=4
  $region2: #{classifier_forward.1} parent=0 // loop_pre_header
    _
  $region3: #{classifier_forward.1} parent=0 // loop_header
    %s11 = sphi 0, %s15
    %p12 = scmp.ge.s32.totalorder %s11, 4
    %s21 = sphi 0, %s23
    %s24 = sphi 0, %s21
    %s25 = sphi 0, %s24
    %s41 = sphi 0, %s25
    %s45 = sphi 0, %s45
    %s47 = sphi 0, %s45
    %s48 = sphi 0, %s47
    %s62 = sphi 0, %s48
    %s66 = sphi 0, %s66
    %s68 = sphi 0, %s66
    %s69 = sphi 0, %s68
    %s83 = sphi 0, %s69
    %s87 = sphi 0, %s87
    %s89 = sphi 0, %s87
    %s90 = sphi 0, %s89
    %s104 = sphi 0, %s90
    %s108 = sphi 0, %s108
    %s110 = sphi 0, %s108
    %s111 = sphi 0, %s110
    %s125 = sphi 0, %s111
    %s131 = sphi 0, %s133
    %s134 = sphi 0, %s131
    %s135 = sphi 0, %s134
    %s151 = sphi 0, %s135
  $region4: #{classifier_forward.1} parent=0 // loop_header_branch
    %14 = sbr.rel (%p12) target = $region8
  $region5: #{classifier_forward.1} parent=0 // loop_body
    %s16 = ssub.s32 %s11, 1
    %s17 = ssub.s32 %s11, 2
    %s18 = sadd.s32 %s11, 1
    %s19 = ssub.s32 %s11, %s18
    %p20 = scmp.eq.s32.totalorder %s19, 0
    %s22 = sadd.s32 %s21, 1
    %s23 = scalar_select %p20, %s21, %s22
    %p26 = pneg %p20
    %p27 = scmp.eq.s32.totalorder %s11, 1
    %p28 = por %p26, %p27
    %p29 = scmp.ne.s32.totalorder %s21, %s24
    %p30 = scmp.eq.s32.totalorder %s11, 0
    %p31 = por %p29, %p30
    %p32 = scmp.ne.s32.totalorder %s21, %s24
    %p33 = scmp.eq.s32.totalorder %s16, 1
    %p34 = por %p32, %p33
    %p35 = scmp.ne.s32.totalorder %s24, %s25
    %p36 = scmp.eq.s32.totalorder %s16, 0
    %p37 = por %p35, %p36
    %p38 = scmp.ne.s32.totalorder %s24, %s25
    %p39 = scmp.eq.s32.totalorder %s17, 1
    %p40 = por %p38, %p39
    %p42 = scmp.ne.s32.totalorder %s25, %s41
    %p43 = scmp.eq.s32.totalorder %s17, 0
    %p44 = por %p42, %p43
    %s46 = sadd.s32 %s45, 1
    %p49 = scmp.eq.s32.totalorder %s11, 1
    %p50 = scmp.ne.s32.totalorder %s45, %s47
    %p51 = scmp.eq.s32.totalorder %s11, 0
    %p52 = por %p50, %p51
    %p53 = scmp.ne.s32.totalorder %s45, %s47
    %p54 = scmp.eq.s32.totalorder %s16, 1
    %p55 = por %p53, %p54
    %p56 = scmp.ne.s32.totalorder %s47, %s48
    %p57 = scmp.eq.s32.totalorder %s16, 0
    %p58 = por %p56, %p57
    %p59 = scmp.ne.s32.totalorder %s47, %s48
    %p60 = scmp.eq.s32.totalorder %s17, 1
    %p61 = por %p59, %p60
    %p63 = scmp.ne.s32.totalorder %s48, %s62
    %p64 = scmp.eq.s32.totalorder %s17, 0
    %p65 = por %p63, %p64
    %s67 = sadd.s32 %s66, 1
    %p70 = scmp.eq.s32.totalorder %s11, 1
    %p71 = scmp.ne.s32.totalorder %s66, %s68
    %p72 = scmp.eq.s32.totalorder %s11, 0
    %p73 = por %p71, %p72
    %p74 = scmp.ne.s32.totalorder %s66, %s68
    %p75 = scmp.eq.s32.totalorder %s16, 1
    %p76 = por %p74, %p75
    %p77 = scmp.ne.s32.totalorder %s68, %s69
    %p78 = scmp.eq.s32.totalorder %s16, 0
    %p79 = por %p77, %p78
    %p80 = scmp.ne.s32.totalorder %s68, %s69
    %p81 = scmp.eq.s32.totalorder %s17, 1
    %p82 = por %p80, %p81
    %p84 = scmp.ne.s32.totalorder %s69, %s83
    %p85 = scmp.eq.s32.totalorder %s17, 0
    %p86 = por %p84, %p85
    %s88 = sadd.s32 %s87, 1
    %p91 = scmp.eq.s32.totalorder %s11, 1
    %p92 = scmp.ne.s32.totalorder %s87, %s89
    %p93 = scmp.eq.s32.totalorder %s11, 0
    %p94 = por %p92, %p93
    %p95 = scmp.ne.s32.totalorder %s87, %s89
    %p96 = scmp.eq.s32.totalorder %s16, 1
    %p97 = por %p95, %p96
    %p98 = scmp.ne.s32.totalorder %s89, %s90
    %p99 = scmp.eq.s32.totalorder %s16, 0
    %p100 = por %p98, %p99
    %p101 = scmp.ne.s32.totalorder %s89, %s90
    %p102 = scmp.eq.s32.totalorder %s17, 1
    %p103 = por %p101, %p102
    %p105 = scmp.ne.s32.totalorder %s90, %s104
    %p106 = scmp.eq.s32.totalorder %s17, 0
    %p107 = por %p105, %p106
    %s109 = sadd.s32 %s108, 1
    %p112 = scmp.eq.s32.totalorder %s11, 1
    %p113 = scmp.ne.s32.totalorder %s108, %s110
    %p114 = scmp.eq.s32.totalorder %s11, 0
    %p115 = por %p113, %p114
    %p116 = scmp.ne.s32.totalorder %s108, %s110
    %p117 = scmp.eq.s32.totalorder %s16, 1
    %p118 = por %p116, %p117
    %p119 = scmp.ne.s32.totalorder %s110, %s111
    %p120 = scmp.eq.s32.totalorder %s16, 0
    %p121 = por %p119, %p120
    %p122 = scmp.ne.s32.totalorder %s110, %s111
    %p123 = scmp.eq.s32.totalorder %s17, 1
    %p124 = por %p122, %p123
    %p126 = scmp.ne.s32.totalorder %s111, %s125
    %p127 = scmp.eq.s32.totalorder %s17, 0
    %p128 = por %p126, %p127
    %s129 = ssub.s32 %s11, %s18
    %p130 = scmp.eq.s32.totalorder %s129, 0
    %s132 = sadd.s32 %s131, 1
    %s133 = scalar_select %p130, %s131, %s132
    %p136 = pneg %p130
    %p137 = scmp.eq.s32.totalorder %s11, 1
    %p138 = por %p136, %p137
    %p139 = scmp.ne.s32.totalorder %s131, %s134
    %p140 = scmp.eq.s32.totalorder %s11, 0
    %p141 = por %p139, %p140
    %p142 = scmp.ne.s32.totalorder %s131, %s134
    %p143 = scmp.eq.s32.totalorder %s16, 1
    %p144 = por %p142, %p143
    %p145 = scmp.ne.s32.totalorder %s134, %s135
    %p146 = scmp.eq.s32.totalorder %s16, 0
    %p147 = por %p145, %p146
    %p148 = scmp.ne.s32.totalorder %s134, %s135
    %p149 = scmp.eq.s32.totalorder %s17, 1
    %p150 = por %p148, %p149
    %p152 = scmp.ne.s32.totalorder %s135, %s151
    %p153 = scmp.eq.s32.totalorder %s17, 0
    %p154 = por %p152, %p153
    %p155 = scmp.le.s32.totalorder 1, %s11
    %p156 = scmp.lt.s32.totalorder %s11, 3
    %p157 = pnand %p155, %p156
    %p158 = pneg %p157
    // Predicated region
    $region9: #{classifier_forward.1} parent=5 // pred_check
      _
    $region10: #{classifier_forward.1} parent=5 // pred_check_branch
      %160 = sbr.rel (%p157) target = $region12
    $region11: #{classifier_forward.1} parent=5 // pred_region
      %s161 = ssub.s32 %s11, 1
      // Predicated region
      $region13: #{classifier_forward.1} parent=11 // pred_check
        %p162 = pneg %p58
      $region14: #{classifier_forward.1} parent=11 // pred_check_branch
        %164 = sbr.rel (%p162) target = $region16
      $region15: #{classifier_forward.1} parent=11 // pred_region
        _
      $region16: #{classifier_forward.1} parent=11 // pred_fallthru
        _
      // Predicated region
      $region17: #{classifier_forward.1} parent=11 // pred_check
        %p165 = pneg %p79
      $region18: #{classifier_forward.1} parent=11 // pred_check_branch
        %167 = sbr.rel (%p165) target = $region20
      $region19: #{classifier_forward.1} parent=11 // pred_region
        _
      $region20: #{classifier_forward.1} parent=11 // pred_fallthru
        _
      // Predicated region
      $region21: #{classifier_forward.1} parent=11 // pred_check
        %p168 = pneg %p100
      $region22: #{classifier_forward.1} parent=11 // pred_check_branch
        %170 = sbr.rel (%p168) target = $region24
      $region23: #{classifier_forward.1} parent=11 // pred_region
        _
      $region24: #{classifier_forward.1} parent=11 // pred_fallthru
        _
      // Predicated region
      $region25: #{classifier_forward.1} parent=11 // pred_check
        %p171 = pneg %p121
      $region26: #{classifier_forward.1} parent=11 // pred_check_branch
        %173 = sbr.rel (%p171) target = $region28
      $region27: #{classifier_forward.1} parent=11 // pred_region
        _
      $region28: #{classifier_forward.1} parent=11 // pred_fallthru
        _
    $region12: #{classifier_forward.1} parent=5 // pred_fallthru
      _
    %p174 = scmp.lt.s32.totalorder %s11, 2
    // Predicated region
    $region29: #{classifier_forward.1} parent=5 // pred_check
      %p175 = pneg %p174
    $region30: #{classifier_forward.1} parent=5 // pred_check_branch
      %177 = sbr.rel (%p175) target = $region32
    $region31: #{classifier_forward.1} parent=5 // pred_region
      // Predicated region
      $region33: #{classifier_forward.1} parent=31 // pred_check
        %p178 = pneg %p31
      $region34: #{classifier_forward.1} parent=31 // pred_check_branch
        %180 = sbr.rel (%p178) target = $region36
      $region35: #{classifier_forward.1} parent=31 // pred_region
        %s181 = smul.u32 16, %s11
        %p182 = scmp.lt.s32.totalorder %s181, 31
        %s183 = scalar_select %p182, %s181, 31
        %s184 = smul.addr %s183, 7
        %s185 = smul.addr %s184, 8
        %s186 = scalar_lea.vmem %s0, %s185
        %s187 = smul.u32 16, %s11
      $region36: #{classifier_forward.1} parent=31 // pred_fallthru
        _
    $region32: #{classifier_forward.1} parent=5 // pred_fallthru
      _
    %p188 = scmp.le.s32.totalorder 1, %s11
    %p189 = scmp.lt.s32.totalorder %s11, 3
    %p190 = pnand %p188, %p189
    %p191 = pneg %p190
    // Predicated region
    $region37: #{classifier_forward.1} parent=5 // pred_check
      _
    $region38: #{classifier_forward.1} parent=5 // pred_check_branch
      %193 = sbr.rel (%p190) target = $region40
    $region39: #{classifier_forward.1} parent=5 // pred_region
      %s194 = ssub.s32 %s11, 1
      %s195 = smul.u32 16, %s16
      %p196 = scmp.lt.s32.totalorder %s195, 31
      %s197 = scalar_select %p196, %s195, 31
      %s198 = smul.addr %s197, 7
      %s199 = smul.addr %s198, 8
      %s200 = scalar_lea.vmem %s0, %s199
      %p201 = pneg %p37
      %p202 = pneg %p34
      %p203 = pneg %p58
      %p204 = pneg %p55
      %p205 = pneg %p79
      %p206 = pneg %p76
      %p207 = pneg %p100
      %p208 = pneg %p97
      %p209 = pneg %p121
      %p210 = pneg %p118
      %p211 = pneg %p147
      %p212 = pneg %p144
      %s213 = smul.u32 16, %s16
      %p214 = scmp.lt.s32.totalorder %s213, 31
      %s215 = scalar_select %p214, %s213, 31
      %s216 = smul.addr %s215, 8
      %s217 = scalar_lea.vmem %s5, %s216
      %s218 = smul.u32 16, %s16
      %p219 = scmp.lt.s32.totalorder %s218, 31
      %s220 = scalar_select %p219, %s218, 31
      %s221 = smul.addr %s220, 7
      %s222 = smul.addr %s221, 8
      %s223 = scalar_lea.vmem %s0, %s222
      %s224 = smul.u32 16, %s16
      %s225 = smul.u32 16, %s16
      %p226 = scmp.lt.s32.totalorder %s225, 31
      %s227 = scalar_select %p226, %s225, 31
      %s228 = smul.addr %s227, 8
      %s229 = scalar_lea.vmem %s5, %s228
      %s230 = smul.u32 16, %s16
      %v232 = vld [vmem:[%s223] sm:$0xff]
      %v233 = vld [vmem:[%s223 + $0x8] sm:$0xff]
      %v234 = vld [vmem:[%s223 + $0x10] sm:$0xff]
      %v235 = vld [vmem:[%s223 + $0x18] sm:$0xff]
      %v236 = vld [vmem:[%s223 + $0x20] sm:$0xff]
      %v237 = vld [vmem:[%s223 + $0x28] sm:$0xff]
      %v238 = vld [vmem:[%s223 + $0x30] sm:$0xff]
      %v239 = vld [vmem:[%s223 + $0x38] sm:$0xff]
      %v240 = vld [vmem:[%s223 + $0x40] sm:$0xff]
      %v241 = vld [vmem:[%s223 + $0x48] sm:$0xff]
      %v242 = vld [vmem:[%s223 + $0x50] sm:$0xff]
      %v243 = vld [vmem:[%s223 + $0x58] sm:$0xff]
      %v244 = vld [vmem:[%s223 + $0x60] sm:$0xff]
      %v245 = vld [vmem:[%s223 + $0x68] sm:$0xff]
      %v246 = vld [vmem:[%s223 + $0x70] sm:$0xff]
      %v247 = vld [vmem:[%s223 + $0x78] sm:$0xff]
      %v248 = vld [vmem:[%s223 + $0x80] sm:$0xff]
      %v249 = vld [vmem:[%s223 + $0x88] sm:$0xff]
      %v250 = vld [vmem:[%s223 + $0x90] sm:$0xff]
      %v251 = vld [vmem:[%s223 + $0x98] sm:$0xff]
      %v252 = vld [vmem:[%s223 + $0xa0] sm:$0xff]
      %v253 = vld [vmem:[%s223 + $0xa8] sm:$0xff]
      %v254 = vld [vmem:[%s223 + $0xb0] sm:$0xff]
      %v255 = vld [vmem:[%s223 + $0xb8] sm:$0xff]
      %v256 = vld [vmem:[%s223 + $0xc0] sm:$0xff]
      %v257 = vld [vmem:[%s223 + $0xc8] sm:$0xff]
      %v258 = vld [vmem:[%s223 + $0xd0] sm:$0xff]
      %v259 = vld [vmem:[%s223 + $0xd8] sm:$0xff]
      %v260 = vld [vmem:[%s223 + $0xe0] sm:$0xff]
      %v261 = vld [vmem:[%s223 + $0xe8] sm:$0xff]
      %v262 = vld [vmem:[%s223 + $0xf0] sm:$0xff]
      %v263 = vld [vmem:[%s223 + $0xf8] sm:$0xff]
      %v264 = vld [vmem:[%s223 + $0x100] sm:$0xff]
      %v265 = vld [vmem:[%s223 + $0x108] sm:$0xff]
      %v266 = vld [vmem:[%s223 + $0x110] sm:$0xff]
      %v267 = vld [vmem:[%s223 + $0x118] sm:$0xff]
      %v268 = vld [vmem:[%s223 + $0x120] sm:$0xff]
      %v269 = vld [vmem:[%s223 + $0x128] sm:$0xff]
      %v270 = vld [vmem:[%s223 + $0x130] sm:$0xff]
      %v271 = vld [vmem:[%s223 + $0x138] sm:$0xff]
      %v272 = vld [vmem:[%s223 + $0x140] sm:$0xff]
      %v273 = vld [vmem:[%s223 + $0x148] sm:$0xff]
      %v274 = vld [vmem:[%s223 + $0x150] sm:$0xff]
      %v275 = vld [vmem:[%s223 + $0x158] sm:$0xff]
      %v276 = vld [vmem:[%s223 + $0x160] sm:$0xff]
      %v277 = vld [vmem:[%s223 + $0x168] sm:$0xff]
      %v278 = vld [vmem:[%s223 + $0x170] sm:$0xff]
      %v279 = vld [vmem:[%s223 + $0x178] sm:$0xff]
      %v280 = vld [vmem:[%s223 + $0x180] sm:$0xff]
      %v281 = vld [vmem:[%s223 + $0x188] sm:$0xff]
      %v282 = vld [vmem:[%s223 + $0x190] sm:$0xff]
      %v283 = vld [vmem:[%s223 + $0x198] sm:$0xff]
      %v284 = vld [vmem:[%s223 + $0x1a0] sm:$0xff]
      %v285 = vld [vmem:[%s223 + $0x1a8] sm:$0xff]
      %v286 = vld [vmem:[%s223 + $0x1b0] sm:$0xff]
      %v287 = vld [vmem:[%s223 + $0x1b8] sm:$0xff]
      %v288 = vld [vmem:[%s223 + $0x1c0] sm:$0xff]
      %v289 = vld [vmem:[%s223 + $0x1c8] sm:$0xff]
      %v290 = vld [vmem:[%s223 + $0x1d0] sm:$0xff]
      %v291 = vld [vmem:[%s223 + $0x1d8] sm:$0xff]
      %v292 = vld [vmem:[%s223 + $0x1e0] sm:$0xff]
      %v293 = vld [vmem:[%s223 + $0x1e8] sm:$0xff]
      %v294 = vld [vmem:[%s223 + $0x1f0] sm:$0xff]
      %v295 = vld [vmem:[%s223 + $0x1f8] sm:$0xff]
      %v296 = vld [vmem:[%s223 + $0x200] sm:$0xff]
      %v297 = vld [vmem:[%s223 + $0x208] sm:$0xff]
      %v298 = vld [vmem:[%s223 + $0x210] sm:$0xff]
      %v299 = vld [vmem:[%s223 + $0x218] sm:$0xff]
      %v300 = vld [vmem:[%s223 + $0x220] sm:$0xff]
      %v301 = vld [vmem:[%s223 + $0x228] sm:$0xff]
      %v302 = vld [vmem:[%s223 + $0x230] sm:$0xff]
      %v303 = vld [vmem:[%s223 + $0x238] sm:$0xff]
      %v304 = vld [vmem:[%s223 + $0x240] sm:$0xff]
      %v305 = vld [vmem:[%s223 + $0x248] sm:$0xff]
      %v306 = vld [vmem:[%s223 + $0x250] sm:$0xff]
      %v307 = vld [vmem:[%s223 + $0x258] sm:$0xff]
      %v308 = vld [vmem:[%s223 + $0x260] sm:$0xff]
      %v309 = vld [vmem:[%s223 + $0x268] sm:$0xff]
      %v310 = vld [vmem:[%s223 + $0x270] sm:$0xff]
      %v311 = vld [vmem:[%s223 + $0x278] sm:$0xff]
      %v312 = vld [vmem:[%s223 + $0x280] sm:$0xff]
      %v313 = vld [vmem:[%s223 + $0x288] sm:$0xff]
      %v314 = vld [vmem:[%s223 + $0x290] sm:$0xff]
      %v315 = vld [vmem:[%s223 + $0x298] sm:$0xff]
      %v316 = vld [vmem:[%s223 + $0x2a0] sm:$0xff]
      %v317 = vld [vmem:[%s223 + $0x2a8] sm:$0xff]
      %v318 = vld [vmem:[%s223 + $0x2b0] sm:$0xff]
      %v319 = vld [vmem:[%s223 + $0x2b8] sm:$0xff]
      %v320 = vld [vmem:[%s223 + $0x2c0] sm:$0xff]
      %v321 = vld [vmem:[%s223 + $0x2c8] sm:$0xff]
      %v322 = vld [vmem:[%s223 + $0x2d0] sm:$0xff]
      %v323 = vld [vmem:[%s223 + $0x2d8] sm:$0xff]
      %v324 = vld [vmem:[%s223 + $0x2e0] sm:$0xff]
      %v325 = vld [vmem:[%s223 + $0x2e8] sm:$0xff]
      %v326 = vld [vmem:[%s223 + $0x2f0] sm:$0xff]
      %v327 = vld [vmem:[%s223 + $0x2f8] sm:$0xff]
      %v328 = vld [vmem:[%s223 + $0x300] sm:$0xff]
      %v329 = vld [vmem:[%s223 + $0x308] sm:$0xff]
      %v330 = vld [vmem:[%s223 + $0x310] sm:$0xff]
      %v331 = vld [vmem:[%s223 + $0x318] sm:$0xff]
      %v332 = vld [vmem:[%s223 + $0x320] sm:$0xff]
      %v333 = vld [vmem:[%s223 + $0x328] sm:$0xff]
      %v334 = vld [vmem:[%s223 + $0x330] sm:$0xff]
      %v335 = vld [vmem:[%s223 + $0x338] sm:$0xff]
      %v336 = vld [vmem:[%s223 + $0x340] sm:$0xff]
      %v337 = vld [vmem:[%s223 + $0x348] sm:$0xff]
      %v338 = vld [vmem:[%s223 + $0x350] sm:$0xff]
      %v339 = vld [vmem:[%s223 + $0x358] sm:$0xff]
      %v340 = vld [vmem:[%s223 + $0x360] sm:$0xff]
      %v341 = vld [vmem:[%s223 + $0x368] sm:$0xff]
      %v342 = vld [vmem:[%s223 + $0x370] sm:$0xff]
      %v343 = vld [vmem:[%s223 + $0x378] sm:$0xff]
      %v344 = vpack.c.bf16 %v239, %v232
      %v345 = vpack.c.bf16 %v240, %v233
      %v346 = vpack.c.bf16 %v241, %v234
      %v347 = vpack.c.bf16 %v242, %v235
      %v348 = vpack.c.bf16 %v243, %v236
      %v349 = vpack.c.bf16 %v244, %v237
      %v350 = vpack.c.bf16 %v245, %v238
      %v351 = vpack.c.bf16 %v253, %v246
      %v352 = vpack.c.bf16 %v254, %v247
      %v353 = vpack.c.bf16 %v255, %v248
      %v354 = vpack.c.bf16 %v256, %v249
      %v355 = vpack.c.bf16 %v257, %v250
      %v356 = vpack.c.bf16 %v258, %v251
      %v357 = vpack.c.bf16 %v259, %v252
      %v358 = vpack.c.bf16 %v267, %v260
      %v359 = vpack.c.bf16 %v268, %v261
      %v360 = vpack.c.bf16 %v269, %v262
      %v361 = vpack.c.bf16 %v270, %v263
      %v362 = vpack.c.bf16 %v271, %v264
      %v363 = vpack.c.bf16 %v272, %v265
      %v364 = vpack.c.bf16 %v273, %v266
      %v365 = vpack.c.bf16 %v281, %v274
      %v366 = vpack.c.bf16 %v282, %v275
      %v367 = vpack.c.bf16 %v283, %v276
      %v368 = vpack.c.bf16 %v284, %v277
      %v369 = vpack.c.bf16 %v285, %v278
      %v370 = vpack.c.bf16 %v286, %v279
      %v371 = vpack.c.bf16 %v287, %v280
      %v372 = vpack.c.bf16 %v295, %v288
      %v373 = vpack.c.bf16 %v296, %v289
      %v374 = vpack.c.bf16 %v297, %v290
      %v375 = vpack.c.bf16 %v298, %v291
      %v376 = vpack.c.bf16 %v299, %v292
      %v377 = vpack.c.bf16 %v300, %v293
      %v378 = vpack.c.bf16 %v301, %v294
      %v379 = vpack.c.bf16 %v309, %v302
      %v380 = vpack.c.bf16 %v310, %v303
      %v381 = vpack.c.bf16 %v311, %v304
      %v382 = vpack.c.bf16 %v312, %v305
      %v383 = vpack.c.bf16 %v313, %v306
      %v384 = vpack.c.bf16 %v314, %v307
      %v385 = vpack.c.bf16 %v315, %v308
      %v386 = vpack.c.bf16 %v323, %v316
      %v387 = vpack.c.bf16 %v324, %v317
      %v388 = vpack.c.bf16 %v325, %v318
      %v389 = vpack.c.bf16 %v326, %v319
      %v390 = vpack.c.bf16 %v327, %v320
      %v391 = vpack.c.bf16 %v328, %v321
      %v392 = vpack.c.bf16 %v329, %v322
      %v393 = vpack.c.bf16 %v337, %v330
      %v394 = vpack.c.bf16 %v338, %v331
      %v395 = vpack.c.bf16 %v339, %v332
      %v396 = vpack.c.bf16 %v340, %v333
      %v397 = vpack.c.bf16 %v341, %v334
      %v398 = vpack.c.bf16 %v342, %v335
      %v399 = vpack.c.bf16 %v343, %v336
      %v400 = vld [vmem:[%s1] sm:$0xf]
      %v401 = vld [vmem:[%s1 + $0x4] sm:$0xf]
      %v402 = vld [vmem:[%s1 + $0x8] sm:$0xf]
      %v403 = vld [vmem:[%s1 + $0xc] sm:$0xf]
      %v404 = vld [vmem:[%s1 + $0x10] sm:$0xf]
      %v405 = vld [vmem:[%s1 + $0x14] sm:$0xf]
      %v406 = vld [vmem:[%s1 + $0x18] sm:$0xf]
      %v407 = vld [vmem:[%s1 + $0x1c] sm:$0xf]
      %v408 = vld [vmem:[%s1 + $0x20] sm:$0xf]
      %v409 = vld [vmem:[%s1 + $0x24] sm:$0xf]
      %v410 = vld [vmem:[%s1 + $0x28] sm:$0xf]
      %v411 = vld [vmem:[%s1 + $0x2c] sm:$0xf]
      %v412 = vld [vmem:[%s1 + $0x30] sm:$0xf]
      %v413 = vld [vmem:[%s1 + $0x34] sm:$0xf]
      %v414 = vld [vmem:[%s1 + $0x38] sm:$0xf]
      %v415 = vld [vmem:[%s1 + $0x3c] sm:$0xf]
      %v416 = vld [vmem:[%s1 + $0x40] sm:$0xf]
      %v417 = vld [vmem:[%s1 + $0x44] sm:$0xf]
      %v418 = vld [vmem:[%s1 + $0x48] sm:$0xf]
      %v419 = vld [vmem:[%s1 + $0x4c] sm:$0xf]
      %v420 = vld [vmem:[%s1 + $0x50] sm:$0xf]
      %v421 = vld [vmem:[%s1 + $0x54] sm:$0xf]
      %v422 = vld [vmem:[%s1 + $0x58] sm:$0xf]
      %v423 = vld [vmem:[%s1 + $0x5c] sm:$0xf]
      %v424 = vld [vmem:[%s1 + $0x60] sm:$0xf]
      %v425 = vld [vmem:[%s1 + $0x64] sm:$0xf]
      %v426 = vld [vmem:[%s1 + $0x68] sm:$0xf]
      %v427 = vld [vmem:[%s1 + $0x6c] sm:$0xf]
      %v428 = vld [vmem:[%s1 + $0x70] sm:$0xf]
      %v429 = vld [vmem:[%s1 + $0x74] sm:$0xf]
      %v430 = vld [vmem:[%s1 + $0x78] sm:$0xf]
      %v431 = vld [vmem:[%s1 + $0x7c] sm:$0xf]
      %v432 = vld [vmem:[%s1 + $0x80] sm:$0xf]
      %v433 = vld [vmem:[%s1 + $0x84] sm:$0xf]
      %v434 = vld [vmem:[%s1 + $0x88] sm:$0xf]
      %v435 = vld [vmem:[%s1 + $0x8c] sm:$0xf]
      %v436 = vld [vmem:[%s1 + $0x90] sm:$0xf]
      %v437 = vld [vmem:[%s1 + $0x94] sm:$0xf]
      %v438 = vld [vmem:[%s1 + $0x98] sm:$0xf]
      %v439 = vld [vmem:[%s1 + $0x9c] sm:$0xf]
      %v440 = vld [vmem:[%s1 + $0xa0] sm:$0xf]
      %v441 = vld [vmem:[%s1 + $0xa4] sm:$0xf]
      %v442 = vld [vmem:[%s1 + $0xa8] sm:$0xf]
      %v443 = vld [vmem:[%s1 + $0xac] sm:$0xf]
      %v444 = vld [vmem:[%s1 + $0xb0] sm:$0xf]
      %v445 = vld [vmem:[%s1 + $0xb4] sm:$0xf]
      %v446 = vld [vmem:[%s1 + $0xb8] sm:$0xf]
      %v447 = vld [vmem:[%s1 + $0xbc] sm:$0xf]
      %v448 = vld [vmem:[%s1 + $0xc0] sm:$0xf]
      %v449 = vld [vmem:[%s1 + $0xc4] sm:$0xf]
      %v450 = vld [vmem:[%s1 + $0xc8] sm:$0xf]
      %v451 = vld [vmem:[%s1 + $0xcc] sm:$0xf]
      %v452 = vld [vmem:[%s1 + $0xd0] sm:$0xf]
      %v453 = vld [vmem:[%s1 + $0xd4] sm:$0xf]
      %v454 = vld [vmem:[%s1 + $0xd8] sm:$0xf]
      %v455 = vld [vmem:[%s1 + $0xdc] sm:$0xf]
      %v456 = vld [vmem:[%s1 + $0xe0] sm:$0xf]
      %v457 = vld [vmem:[%s1 + $0xe4] sm:$0xf]
      %v458 = vld [vmem:[%s1 + $0xe8] sm:$0xf]
      %v459 = vld [vmem:[%s1 + $0xec] sm:$0xf]
      %v460 = vld [vmem:[%s1 + $0xf0] sm:$0xf]
      %v461 = vld [vmem:[%s1 + $0xf4] sm:$0xf]
      %v462 = vld [vmem:[%s1 + $0xf8] sm:$0xf]
      %v463 = vld [vmem:[%s1 + $0xfc] sm:$0xf]
      %v464 = vld [vmem:[%s1 + $0x100] sm:$0xf]
      %v465 = vld [vmem:[%s1 + $0x104] sm:$0xf]
      %v466 = vld [vmem:[%s1 + $0x108] sm:$0xf]
      %v467 = vld [vmem:[%s1 + $0x10c] sm:$0xf]
      %v468 = vld [vmem:[%s1 + $0x110] sm:$0xf]
      %v469 = vld [vmem:[%s1 + $0x114] sm:$0xf]
      %v470 = vld [vmem:[%s1 + $0x118] sm:$0xf]
      %v471 = vld [vmem:[%s1 + $0x11c] sm:$0xf]
      %v472 = vld [vmem:[%s1 + $0x120] sm:$0xf]
      %v473 = vld [vmem:[%s1 + $0x124] sm:$0xf]
      %v474 = vld [vmem:[%s1 + $0x128] sm:$0xf]
      %v475 = vld [vmem:[%s1 + $0x12c] sm:$0xf]
      %v476 = vld [vmem:[%s1 + $0x130] sm:$0xf]
      %v477 = vld [vmem:[%s1 + $0x134] sm:$0xf]
      %v478 = vld [vmem:[%s1 + $0x138] sm:$0xf]
      %v479 = vld [vmem:[%s1 + $0x13c] sm:$0xf]
      %v480 = vld [vmem:[%s1 + $0x140] sm:$0xf]
      %v481 = vld [vmem:[%s1 + $0x144] sm:$0xf]
      %v482 = vld [vmem:[%s1 + $0x148] sm:$0xf]
      %v483 = vld [vmem:[%s1 + $0x14c] sm:$0xf]
      %v484 = vld [vmem:[%s1 + $0x150] sm:$0xf]
      %v485 = vld [vmem:[%s1 + $0x154] sm:$0xf]
      %v486 = vld [vmem:[%s1 + $0x158] sm:$0xf]
      %v487 = vld [vmem:[%s1 + $0x15c] sm:$0xf]
      %v488 = vld [vmem:[%s1 + $0x160] sm:$0xf]
      %v489 = vld [vmem:[%s1 + $0x164] sm:$0xf]
      %v490 = vld [vmem:[%s1 + $0x168] sm:$0xf]
      %v491 = vld [vmem:[%s1 + $0x16c] sm:$0xf]
      %v492 = vld [vmem:[%s1 + $0x170] sm:$0xf]
      %v493 = vld [vmem:[%s1 + $0x174] sm:$0xf]
      %v494 = vld [vmem:[%s1 + $0x178] sm:$0xf]
      %v495 = vld [vmem:[%s1 + $0x17c] sm:$0xf]
      %v496 = vld [vmem:[%s1 + $0x180] sm:$0xf]
      %v497 = vld [vmem:[%s1 + $0x184] sm:$0xf]
      %v498 = vld [vmem:[%s2] sm:$0x1]
      %v500 = vlaneseq
      %v501 = vshrl.u32 %v500, 7
      %v502 = vsub.s32 0, %v501
      %v503 = vrot.slane %v498, %v502
      %v603 = vunpack.c.l.b16 %v400
      %v604 = vunpack.c.l.b16 %v401
      %v605 = vunpack.c.l.b16 %v402
      %v606 = vunpack.c.l.b16 %v403
      %v607 = vunpack.c.l.b16 %v404
      %v608 = vunpack.c.l.b16 %v405
      %v609 = vunpack.c.l.b16 %v406
      %v610 = vunpack.c.l.b16 %v407
      %v611 = vunpack.c.l.b16 %v408
      %v612 = vunpack.c.l.b16 %v409
      %v613 = vunpack.c.l.b16 %v410
      %v614 = vunpack.c.l.b16 %v411
      %v615 = vunpack.c.l.b16 %v412
      %v616 = vunpack.c.l.b16 %v413
      %v617 = vunpack.c.l.b16 %v414
      %v618 = vunpack.c.l.b16 %v415
      %v619 = vunpack.c.l.b16 %v416
      %v620 = vunpack.c.l.b16 %v417
      %v621 = vunpack.c.l.b16 %v418
      %v622 = vunpack.c.l.b16 %v419
      %v623 = vunpack.c.l.b16 %v420
      %v624 = vunpack.c.l.b16 %v421
      %v625 = vunpack.c.l.b16 %v422
      %v626 = vunpack.c.l.b16 %v423
      %v627 = vunpack.c.l.b16 %v424
      %v628 = vunpack.c.l.b16 %v425
      %v629 = vunpack.c.l.b16 %v426
      %v630 = vunpack.c.l.b16 %v427
      %v631 = vunpack.c.l.b16 %v428
      %v632 = vunpack.c.l.b16 %v429
      %v633 = vunpack.c.l.b16 %v430
      %v634 = vunpack.c.l.b16 %v431
      %v635 = vunpack.c.l.b16 %v432
      %v636 = vunpack.c.l.b16 %v433
      %v637 = vunpack.c.l.b16 %v434
      %v638 = vunpack.c.l.b16 %v435
      %v639 = vunpack.c.l.b16 %v436
      %v640 = vunpack.c.l.b16 %v437
      %v641 = vunpack.c.l.b16 %v438
      %v642 = vunpack.c.l.b16 %v439
      %v643 = vunpack.c.l.b16 %v440
      %v644 = vunpack.c.l.b16 %v441
      %v645 = vunpack.c.l.b16 %v442
      %v646 = vunpack.c.l.b16 %v443
      %v647 = vunpack.c.l.b16 %v444
      %v648 = vunpack.c.l.b16 %v445
      %v649 = vunpack.c.l.b16 %v446
      %v650 = vunpack.c.l.b16 %v447
      %v651 = vunpack.c.l.b16 %v448
      %v652 = vunpack.c.l.b16 %v449
      %v653 = vunpack.c.l.b16 %v450
      %v654 = vunpack.c.l.b16 %v451
      %v655 = vunpack.c.l.b16 %v452
      %v656 = vunpack.c.l.b16 %v453
      %v657 = vunpack.c.l.b16 %v454
      %v658 = vunpack.c.l.b16 %v455
      %v659 = vunpack.c.l.b16 %v456
      %v660 = vunpack.c.l.b16 %v457
      %v661 = vunpack.c.l.b16 %v458
      %v662 = vunpack.c.l.b16 %v459
      %v663 = vunpack.c.l.b16 %v460
      %v664 = vunpack.c.l.b16 %v461
      %v665 = vunpack.c.l.b16 %v462
      %v666 = vunpack.c.l.b16 %v463
      %v667 = vunpack.c.l.b16 %v464
      %v668 = vunpack.c.l.b16 %v465
      %v669 = vunpack.c.l.b16 %v466
      %v670 = vunpack.c.l.b16 %v467
      %v671 = vunpack.c.l.b16 %v468
      %v672 = vunpack.c.l.b16 %v469
      %v673 = vunpack.c.l.b16 %v470
      %v674 = vunpack.c.l.b16 %v471
      %v675 = vunpack.c.l.b16 %v472
      %v676 = vunpack.c.l.b16 %v473
      %v677 = vunpack.c.l.b16 %v474
      %v678 = vunpack.c.l.b16 %v475
      %v679 = vunpack.c.l.b16 %v476
      %v680 = vunpack.c.l.b16 %v477
      %v681 = vunpack.c.l.b16 %v478
      %v682 = vunpack.c.l.b16 %v479
      %v683 = vunpack.c.l.b16 %v480
      %v684 = vunpack.c.l.b16 %v481
      %v685 = vunpack.c.l.b16 %v482
      %v686 = vunpack.c.l.b16 %v483
      %v687 = vunpack.c.l.b16 %v484
      %v688 = vunpack.c.l.b16 %v485
      %v689 = vunpack.c.l.b16 %v486
      %v690 = vunpack.c.l.b16 %v487
      %v691 = vunpack.c.l.b16 %v488
      %v692 = vunpack.c.l.b16 %v489
      %v693 = vunpack.c.l.b16 %v490
      %v694 = vunpack.c.l.b16 %v491
      %v695 = vunpack.c.l.b16 %v492
      %v696 = vunpack.c.l.b16 %v493
      %v697 = vunpack.c.l.b16 %v494
      %v698 = vunpack.c.l.b16 %v495
      %v699 = vunpack.c.l.b16 %v496
      %v700 = vunpack.c.l.b16 %v497
      %v701 = vpack.c.b16 %v604, %v603
      %v702 = vpack.c.b16 %v606, %v605
      %v703 = vpack.c.b16 %v608, %v607
      %v704 = vpack.c.b16 %v610, %v609
      %v705 = vpack.c.b16 %v612, %v611
      %v706 = vpack.c.b16 %v614, %v613
      %v707 = vpack.c.b16 %v616, %v615
      %v708 = vpack.c.b16 %v618, %v617
      %v709 = vpack.c.b16 %v620, %v619
      %v710 = vpack.c.b16 %v622, %v621
      %v711 = vpack.c.b16 %v624, %v623
      %v712 = vpack.c.b16 %v626, %v625
      %v713 = vpack.c.b16 %v628, %v627
      %v714 = vpack.c.b16 %v630, %v629
      %v715 = vpack.c.b16 %v632, %v631
      %v716 = vpack.c.b16 %v634, %v633
      %v717 = vpack.c.b16 %v636, %v635
      %v718 = vpack.c.b16 %v638, %v637
      %v719 = vpack.c.b16 %v640, %v639
      %v720 = vpack.c.b16 %v642, %v641
      %v721 = vpack.c.b16 %v644, %v643
      %v722 = vpack.c.b16 %v646, %v645
      %v723 = vpack.c.b16 %v648, %v647
      %v724 = vpack.c.b16 %v650, %v649
      %v725 = vpack.c.b16 %v652, %v651
      %v726 = vpack.c.b16 %v654, %v653
      %v727 = vpack.c.b16 %v656, %v655
      %v728 = vpack.c.b16 %v658, %v657
      %v729 = vpack.c.b16 %v660, %v659
      %v730 = vpack.c.b16 %v662, %v661
      %v731 = vpack.c.b16 %v664, %v663
      %v732 = vpack.c.b16 %v666, %v665
      %v733 = vpack.c.b16 %v668, %v667
      %v734 = vpack.c.b16 %v670, %v669
      %v735 = vpack.c.b16 %v672, %v671
      %v736 = vpack.c.b16 %v674, %v673
      %v737 = vpack.c.b16 %v676, %v675
      %v738 = vpack.c.b16 %v678, %v677
      %v739 = vpack.c.b16 %v680, %v679
      %v740 = vpack.c.b16 %v682, %v681
      %v741 = vpack.c.b16 %v684, %v683
      %v742 = vpack.c.b16 %v686, %v685
      %v743 = vpack.c.b16 %v688, %v687
      %v744 = vpack.c.b16 %v690, %v689
      %v745 = vpack.c.b16 %v692, %v691
      %v746 = vpack.c.b16 %v694, %v693
      %v747 = vpack.c.b16 %v696, %v695
      %v748 = vpack.c.b16 %v698, %v697
      %v749 = vpack.c.b16 %v700, %v699
      %vm799 = vcmask 130048
      %v801 = vsel %vm799, %v350, 0
      %v804 = vsel %vm799, %v357, 0
      %v807 = vsel %vm799, %v364, 0
      %v810 = vsel %vm799, %v371, 0
      %v813 = vsel %vm799, %v378, 0
      %v816 = vsel %vm799, %v385, 0
      %v819 = vsel %vm799, %v392, 0
      %v822 = vsel %vm799, %v399, 0
      %824 = vmatprep.subr.bf16.mxu0 0
      %825 = vmatpush1.bf16.msra.mxu0 %v701
      %826 = vmatprep.subr.bf16.mxu0 0
      %827 = vmatpush1.bf16.msra.mxu0 %v702
      %828 = vmatprep.subr.bf16.mxu0 0
      %829 = vmatpush1.bf16.msra.mxu0 %v703
      %830 = vmatprep.subr.bf16.mxu0 0
      %831 = vmatpush1.bf16.msra.mxu0 %v704
      %832 = vmatprep.subr.bf16.mxu0 0
      %833 = vmatpush1.bf16.msra.mxu0 %v705
      %834 = vmatprep.subr.bf16.mxu0 0
      %835 = vmatpush1.bf16.msra.mxu0 %v706
      %836 = vmatprep.subr.bf16.mxu0 0
      %837 = vmatpush1.bf16.msra.mxu0 %v707
      %838 = vmatprep.subr.bf16.mxu0 0
      %839 = vmatpush1.bf16.msra.mxu0 %v708
      %840 = vmatprep.subr.bf16.mxu0 0
      %841 = vmatpush1.bf16.msra.mxu0 %v709
      %842 = vmatprep.subr.bf16.mxu0 0
      %843 = vmatpush1.bf16.msra.mxu0 %v710
      %844 = vmatprep.subr.bf16.mxu0 0
      %845 = vmatpush1.bf16.msra.mxu0 %v711
      %846 = vmatprep.subr.bf16.mxu0 0
      %847 = vmatpush1.bf16.msra.mxu0 %v712
      %848 = vmatprep.subr.bf16.mxu0 0
      %849 = vmatpush1.bf16.msra.mxu0 %v713
      %850 = vmatprep.subr.bf16.mxu0 0
      %851 = vmatpush1.bf16.msra.mxu0 %v714
      %852 = vmatprep.subr.bf16.mxu0 0
      %853 = vmatpush1.bf16.msra.mxu0 %v715
      %854 = vmatprep.subr.bf16.mxu0 0
      %855 = vmatpush1.bf16.msra.mxu0 %v716
      %856 = vmatprep.mubr.bf16.mxu0 %v345
      %857 = vmatmul.mubr.bf16.gmra.mrb[0].mxu0 %v344
      %v858 = vpop.f32.mrb[0].mxu0
      %v859 = vadd.f32 %v503, %v858
      %v860 = vpop.f32.mrb[0].mxu0
      %v861 = vpop.f32.mrb[0].mxu0
      %v862 = vadd.f32 %v503, %v861
      %v863 = vpop.f32.mrb[0].mxu0
      %864 = vmatprep.mubr.bf16.mxu0 %v352
      %865 = vmatmul.mubr.bf16.gmra.mrb[0].mxu0 %v351
      %v866 = vpop.f32.mrb[0].mxu0
      %v867 = vadd.f32 %v503, %v866
      %v868 = vpop.f32.mrb[0].mxu0
      %v869 = vpop.f32.mrb[0].mxu0
      %v870 = vadd.f32 %v503, %v869
      %v871 = vpop.f32.mrb[0].mxu0
      %872 = vmatprep.mubr.bf16.mxu0 %v359
      %873 = vmatmul.mubr.bf16.gmra.mrb[0].mxu0 %v358
      %v874 = vpop.f32.mrb[0].mxu0
      %v875 = vadd.f32 %v503, %v874
      %v876 = vpop.f32.mrb[0].mxu0
      %v877 = vpop.f32.mrb[0].mxu0
      %v878 = vadd.f32 %v503, %v877
      %v879 = vpop.f32.mrb[0].mxu0
      %880 = vmatprep.mubr.bf16.mxu0 %v366
      %881 = vmatmul.mubr.bf16.gmra.mrb[0].mxu0 %v365
      %v882 = vpop.f32.mrb[0].mxu0
      %v883 = vadd.f32 %v503, %v882
      %v884 = vpop.f32.mrb[0].mxu0
      %v885 = vpop.f32.mrb[0].mxu0
      %v886 = vadd.f32 %v503, %v885
      %v887 = vpop.f32.mrb[0].mxu0
      %888 = vmatprep.mubr.bf16.mxu0 %v373
      %889 = vmatmul.mubr.bf16.gmra.mrb[0].mxu0 %v372
      %v890 = vpop.f32.mrb[0].mxu0
      %v891 = vadd.f32 %v503, %v890
      %v892 = vpop.f32.mrb[0].mxu0
      %v893 = vpop.f32.mrb[0].mxu0
      %v894 = vadd.f32 %v503, %v893
      %v895 = vpop.f32.mrb[0].mxu0
      %896 = vmatprep.mubr.bf16.mxu0 %v380
      %897 = vmatmul.mubr.bf16.gmra.mrb[0].mxu0 %v379
      %v898 = vpop.f32.mrb[0].mxu0
      %v899 = vadd.f32 %v503, %v898
      %v900 = vpop.f32.mrb[0].mxu0
      %v901 = vpop.f32.mrb[0].mxu0
      %v902 = vadd.f32 %v503, %v901
      %v903 = vpop.f32.mrb[0].mxu0
      %904 = vmatprep.mubr.bf16.mxu0 %v387
      %905 = vmatmul.mubr.bf16.gmra.mrb[0].mxu0 %v386
      %v906 = vpop.f32.mrb[0].mxu0
      %v907 = vadd.f32 %v503, %v906
      %v908 = vpop.f32.mrb[0].mxu0
      %v909 = vpop.f32.mrb[0].mxu0
      %v910 = vadd.f32 %v503, %v909
      %v911 = vpop.f32.mrb[0].mxu0
      %912 = vmatprep.mubr.bf16.mxu0 %v394
      %913 = vmatmul.mubr.bf16.gmra.mrb[0].mxu0 %v393
      %v914 = vpop.f32.mrb[0].mxu0
      %v915 = vadd.f32 %v503, %v914
      %v916 = vpop.f32.mrb[0].mxu0
      %v917 = vpop.f32.mrb[0].mxu0
      %v918 = vadd.f32 %v503, %v917
      %v919 = vpop.f32.mrb[0].mxu0
      %920 = vdwg.mxu0
      %921 = vmatprep.subr.bf16.mxu0 0
      %922 = vmatpush1.bf16.msra.mxu0 %v717
      %923 = vmatprep.subr.bf16.mxu0 0
      %924 = vmatpush1.bf16.msra.mxu0 %v718
      %925 = vmatprep.subr.bf16.mxu0 0
      %926 = vmatpush1.bf16.msra.mxu0 %v719
      %927 = vmatprep.subr.bf16.mxu0 0
      %928 = vmatpush1.bf16.msra.mxu0 %v720
      %929 = vmatprep.subr.bf16.mxu0 0
      %930 = vmatpush1.bf16.msra.mxu0 %v721
      %931 = vmatprep.subr.bf16.mxu0 0
      %932 = vmatpush1.bf16.msra.mxu0 %v722
      %933 = vmatprep.subr.bf16.mxu0 0
      %934 = vmatpush1.bf16.msra.mxu0 %v723
      %935 = vmatprep.subr.bf16.mxu0 0
      %936 = vmatpush1.bf16.msra.mxu0 %v724
      %937 = vmatprep.subr.bf16.mxu0 0
      %938 = vmatpush1.bf16.msra.mxu0 %v725
      %939 = vmatprep.subr.bf16.mxu0 0
      %940 = vmatpush1.bf16.msra.mxu0 %v726
      %941 = vmatprep.subr.bf16.mxu0 0
      %942 = vmatpush1.bf16.msra.mxu0 %v727
      %943 = vmatprep.subr.bf16.mxu0 0
      %944 = vmatpush1.bf16.msra.mxu0 %v728
      %945 = vmatprep.subr.bf16.mxu0 0
      %946 = vmatpush1.bf16.msra.mxu0 %v729
      %947 = vmatprep.subr.bf16.mxu0 0
      %948 = vmatpush1.bf16.msra.mxu0 %v730
      %949 = vmatprep.subr.bf16.mxu0 0
      %950 = vmatpush1.bf16.msra.mxu0 %v731
      %951 = vmatprep.subr.bf16.mxu0 0
      %952 = vmatpush1.bf16.msra.mxu0 %v732
      %953 = vmatprep.mubr.bf16.mxu0 %v347
      %954 = vmatmul.mubr.bf16.gmra.mrb[0].mxu0 %v346
      %v955 = vpop.f32.mrb[0].mxu0
      %v956 = vadd.f32 %v859, %v955
      %v957 = vpop.f32.mrb[0].mxu0
      %v958 = vpop.f32.mrb[0].mxu0
      %v959 = vadd.f32 %v862, %v958
      %v960 = vpop.f32.mrb[0].mxu0
      %961 = vmatprep.mubr.bf16.mxu0 %v354
      %962 = vmatmul.mubr.bf16.gmra.mrb[0].mxu0 %v353
      %v963 = vpop.f32.mrb[0].mxu0
      %v964 = vadd.f32 %v867, %v963
      %v965 = vpop.f32.mrb[0].mxu0
      %v966 = vpop.f32.mrb[0].mxu0
      %v967 = vadd.f32 %v870, %v966
      %v968 = vpop.f32.mrb[0].mxu0
      %969 = vmatprep.mubr.bf16.mxu0 %v361
      %970 = vmatmul.mubr.bf16.gmra.mrb[0].mxu0 %v360
      %v971 = vpop.f32.mrb[0].mxu0
      %v972 = vadd.f32 %v875, %v971
      %v973 = vpop.f32.mrb[0].mxu0
      %v974 = vpop.f32.mrb[0].mxu0
      %v975 = vadd.f32 %v878, %v974
      %v976 = vpop.f32.mrb[0].mxu0
      %977 = vmatprep.mubr.bf16.mxu0 %v368
      %978 = vmatmul.mubr.bf16.gmra.mrb[0].mxu0 %v367
      %v979 = vpop.f32.mrb[0].mxu0
      %v980 = vadd.f32 %v883, %v979
      %v981 = vpop.f32.mrb[0].mxu0
      %v982 = vpop.f32.mrb[0].mxu0
      %v983 = vadd.f32 %v886, %v982
      %v984 = vpop.f32.mrb[0].mxu0
      %985 = vmatprep.mubr.bf16.mxu0 %v375
      %986 = vmatmul.mubr.bf16.gmra.mrb[0].mxu0 %v374
      %v987 = vpop.f32.mrb[0].mxu0
      %v988 = vadd.f32 %v891, %v987
      %v989 = vpop.f32.mrb[0].mxu0
      %v990 = vpop.f32.mrb[0].mxu0
      %v991 = vadd.f32 %v894, %v990
      %v992 = vpop.f32.mrb[0].mxu0
      %993 = vmatprep.mubr.bf16.mxu0 %v382
      %994 = vmatmul.mubr.bf16.gmra.mrb[0].mxu0 %v381
      %v995 = vpop.f32.mrb[0].mxu0
      %v996 = vadd.f32 %v899, %v995
      %v997 = vpop.f32.mrb[0].mxu0
      %v998 = vpop.f32.mrb[0].mxu0
      %v999 = vadd.f32 %v902, %v998
      %v1000 = vpop.f32.mrb[0].mxu0
      %1001 = vmatprep.mubr.bf16.mxu0 %v389
      %1002 = vmatmul.mubr.bf16.gmra.mrb[0].mxu0 %v388
      %v1003 = vpop.f32.mrb[0].mxu0
      %v1004 = vadd.f32 %v907, %v1003
      %v1005 = vpop.f32.mrb[0].mxu0
      %v1006 = vpop.f32.mrb[0].mxu0
      %v1007 = vadd.f32 %v910, %v1006
      %v1008 = vpop.f32.mrb[0].mxu0
      %1009 = vmatprep.mubr.bf16.mxu0 %v396
      %1010 = vmatmul.mubr.bf16.gmra.mrb[0].mxu0 %v395
      %v1011 = vpop.f32.mrb[0].mxu0
      %v1012 = vadd.f32 %v915, %v1011
      %v1013 = vpop.f32.mrb[0].mxu0
      %v1014 = vpop.f32.mrb[0].mxu0
      %v1015 = vadd.f32 %v918, %v1014
      %v1016 = vpop.f32.mrb[0].mxu0
      %1017 = vdwg.mxu0
      %1018 = vmatprep.subr.bf16.mxu0 0
      %1019 = vmatpush1.bf16.msra.mxu0 %v733
      %1020 = vmatprep.subr.bf16.mxu0 0
      %1021 = vmatpush1.bf16.msra.mxu0 %v734
      %1022 = vmatprep.subr.bf16.mxu0 0
      %1023 = vmatpush1.bf16.msra.mxu0 %v735
      %1024 = vmatprep.subr.bf16.mxu0 0
      %1025 = vmatpush1.bf16.msra.mxu0 %v736
      %1026 = vmatprep.subr.bf16.mxu0 0
      %1027 = vmatpush1.bf16.msra.mxu0 %v737
      %1028 = vmatprep.subr.bf16.mxu0 0
      %1029 = vmatpush1.bf16.msra.mxu0 %v738
      %1030 = vmatprep.subr.bf16.mxu0 0
      %1031 = vmatpush1.bf16.msra.mxu0 %v739
      %1032 = vmatprep.subr.bf16.mxu0 0
      %1033 = vmatpush1.bf16.msra.mxu0 %v740
      %1034 = vmatprep.subr.bf16.mxu0 0
      %1035 = vmatpush1.bf16.msra.mxu0 %v741
      %1036 = vmatprep.subr.bf16.mxu0 0
      %1037 = vmatpush1.bf16.msra.mxu0 %v742
      %1038 = vmatprep.subr.bf16.mxu0 0
      %1039 = vmatpush1.bf16.msra.mxu0 %v743
      %1040 = vmatprep.subr.bf16.mxu0 0
      %1041 = vmatpush1.bf16.msra.mxu0 %v744
      %1042 = vmatprep.subr.bf16.mxu0 0
      %1043 = vmatpush1.bf16.msra.mxu0 %v745
      %1044 = vmatprep.subr.bf16.mxu0 0
      %1045 = vmatpush1.bf16.msra.mxu0 %v746
      %1046 = vmatprep.subr.bf16.mxu0 0
      %1047 = vmatpush1.bf16.msra.mxu0 %v747
      %1048 = vmatprep.subr.bf16.mxu0 0
      %1049 = vmatpush1.bf16.msra.mxu0 %v748
      %1050 = vmatprep.mubr.bf16.mxu0 %v349
      %1051 = vmatmul.mubr.bf16.gmra.mrb[0].mxu0 %v348
      %v1052 = vpop.f32.mrb[0].mxu0
      %v1053 = vadd.f32 %v956, %v1052
      %v1054 = vpop.f32.mrb[0].mxu0
      %v1055 = vpop.f32.mrb[0].mxu0
      %v1056 = vadd.f32 %v959, %v1055
      %v1057 = vpop.f32.mrb[0].mxu0
      %1058 = vmatprep.mubr.bf16.mxu0 %v356
      %1059 = vmatmul.mubr.bf16.gmra.mrb[0].mxu0 %v355
      %v1060 = vpop.f32.mrb[0].mxu0
      %v1061 = vadd.f32 %v964, %v1060
      %v1062 = vpop.f32.mrb[0].mxu0
      %v1063 = vpop.f32.mrb[0].mxu0
      %v1064 = vadd.f32 %v967, %v1063
      %v1065 = vpop.f32.mrb[0].mxu0
      %1066 = vmatprep.mubr.bf16.mxu0 %v363
      %1067 = vmatmul.mubr.bf16.gmra.mrb[0].mxu0 %v362
      %v1068 = vpop.f32.mrb[0].mxu0
      %v1069 = vadd.f32 %v972, %v1068
      %v1070 = vpop.f32.mrb[0].mxu0
      %v1071 = vpop.f32.mrb[0].mxu0
      %v1072 = vadd.f32 %v975, %v1071
      %v1073 = vpop.f32.mrb[0].mxu0
      %1074 = vmatprep.mubr.bf16.mxu0 %v370
      %1075 = vmatmul.mubr.bf16.gmra.mrb[0].mxu0 %v369
      %v1076 = vpop.f32.mrb[0].mxu0
      %v1077 = vadd.f32 %v980, %v1076
      %v1078 = vpop.f32.mrb[0].mxu0
      %v1079 = vpop.f32.mrb[0].mxu0
      %v1080 = vadd.f32 %v983, %v1079
      %v1081 = vpop.f32.mrb[0].mxu0
      %1082 = vmatprep.mubr.bf16.mxu0 %v377
      %1083 = vmatmul.mubr.bf16.gmra.mrb[0].mxu0 %v376
      %v1084 = vpop.f32.mrb[0].mxu0
      %v1085 = vadd.f32 %v988, %v1084
      %v1086 = vpop.f32.mrb[0].mxu0
      %v1087 = vpop.f32.mrb[0].mxu0
      %v1088 = vadd.f32 %v991, %v1087
      %v1089 = vpop.f32.mrb[0].mxu0
      %1090 = vmatprep.mubr.bf16.mxu0 %v384
      %1091 = vmatmul.mubr.bf16.gmra.mrb[0].mxu0 %v383
      %v1092 = vpop.f32.mrb[0].mxu0
      %v1093 = vadd.f32 %v996, %v1092
      %v1094 = vpop.f32.mrb[0].mxu0
      %v1095 = vpop.f32.mrb[0].mxu0
      %v1096 = vadd.f32 %v999, %v1095
      %v1097 = vpop.f32.mrb[0].mxu0
      %1098 = vmatprep.mubr.bf16.mxu0 %v391
      %1099 = vmatmul.mubr.bf16.gmra.mrb[0].mxu0 %v390
      %v1100 = vpop.f32.mrb[0].mxu0
      %v1101 = vadd.f32 %v1004, %v1100
      %v1102 = vpop.f32.mrb[0].mxu0
      %v1103 = vpop.f32.mrb[0].mxu0
      %v1104 = vadd.f32 %v1007, %v1103
      %v1105 = vpop.f32.mrb[0].mxu0
      %1106 = vmatprep.mubr.bf16.mxu0 %v398
      %1107 = vmatmul.mubr.bf16.gmra.mrb[0].mxu0 %v397
      %v1108 = vpop.f32.mrb[0].mxu0
      %v1109 = vadd.f32 %v1012, %v1108
      %v1110 = vpop.f32.mrb[0].mxu0
      %v1111 = vpop.f32.mrb[0].mxu0
      %v1112 = vadd.f32 %v1015, %v1111
      %v1113 = vpop.f32.mrb[0].mxu0
      %1114 = vdwg.mxu0
      %1115 = vmatprep.subr.bf16.mxu0 0
      %1116 = vmatpush1.bf16.msra.mxu0 %v749
      %1117 = vmatprep.subr.bf16.mxu0 0
      %1118 = vmatpush1.bf16.msra.mxu0 0
      %1119 = vmatprep.subr.bf16.mxu0 0
      %1120 = vmatpush1.bf16.msra.mxu0 0
      %1121 = vmatprep.subr.bf16.mxu0 0
      %1122 = vmatpush1.bf16.msra.mxu0 0
      %1123 = vmatprep.subr.bf16.mxu0 0
      %1124 = vmatpush1.bf16.msra.mxu0 0
      %1125 = vmatprep.subr.bf16.mxu0 0
      %1126 = vmatpush1.bf16.msra.mxu0 0
      %1127 = vmatprep.subr.bf16.mxu0 0
      %1128 = vmatpush1.bf16.msra.mxu0 0
      %1129 = vmatprep.subr.bf16.mxu0 0
      %1130 = vmatpush1.bf16.msra.mxu0 0
      %1131 = vmatprep.subr.bf16.mxu0 0
      %1132 = vmatpush1.bf16.msra.mxu0 0
      %1133 = vmatprep.subr.bf16.mxu0 0
      %1134 = vmatpush1.bf16.msra.mxu0 0
      %1135 = vmatprep.subr.bf16.mxu0 0
      %1136 = vmatpush1.bf16.msra.mxu0 0
      %1137 = vmatprep.subr.bf16.mxu0 0
      %1138 = vmatpush1.bf16.msra.mxu0 0
      %1139 = vmatprep.subr.bf16.mxu0 0
      %1140 = vmatpush1.bf16.msra.mxu0 0
      %1141 = vmatprep.subr.bf16.mxu0 0
      %1142 = vmatpush1.bf16.msra.mxu0 0
      %1143 = vmatprep.subr.bf16.mxu0 0
      %1144 = vmatpush1.bf16.msra.mxu0 0
      %1145 = vmatprep.subr.bf16.mxu0 0
      %1146 = vmatpush1.bf16.msra.mxu0 0
      %1147 = vmatprep.mubr.bf16.mxu0 0
      %1148 = vmatmul.mubr.bf16.gmra.mrb[0].mxu0 %v801
      %v1149 = vpop.f32.mrb[0].mxu0
      %v1150 = vadd.f32 %v1053, %v1149
      %v1151 = vpop.f32.mrb[0].mxu0
      %v1152 = vpop.f32.mrb[0].mxu0
      %v1153 = vadd.f32 %v1056, %v1152
      %v1154 = vpop.f32.mrb[0].mxu0
      %1155 = vmatprep.mubr.bf16.mxu0 0
      %1156 = vmatmul.mubr.bf16.gmra.mrb[0].mxu0 %v804
      %v1157 = vpop.f32.mrb[0].mxu0
      %v1158 = vadd.f32 %v1061, %v1157
      %v1159 = vpop.f32.mrb[0].mxu0
      %v1160 = vpop.f32.mrb[0].mxu0
      %v1161 = vadd.f32 %v1064, %v1160
      %v1162 = vpop.f32.mrb[0].mxu0
      %1163 = vmatprep.mubr.bf16.mxu0 0
      %1164 = vmatmul.mubr.bf16.gmra.mrb[0].mxu0 %v807
      %v1165 = vpop.f32.mrb[0].mxu0
      %v1166 = vadd.f32 %v1069, %v1165
      %v1167 = vpop.f32.mrb[0].mxu0
      %v1168 = vpop.f32.mrb[0].mxu0
      %v1169 = vadd.f32 %v1072, %v1168
      %v1170 = vpop.f32.mrb[0].mxu0
      %1171 = vmatprep.mubr.bf16.mxu0 0
      %1172 = vmatmul.mubr.bf16.gmra.mrb[0].mxu0 %v810
      %v1173 = vpop.f32.mrb[0].mxu0
      %v1174 = vadd.f32 %v1077, %v1173
      %v1175 = vpop.f32.mrb[0].mxu0
      %v1176 = vpop.f32.mrb[0].mxu0
      %v1177 = vadd.f32 %v1080, %v1176
      %v1178 = vpop.f32.mrb[0].mxu0
      %1179 = vmatprep.mubr.bf16.mxu0 0
      %1180 = vmatmul.mubr.bf16.gmra.mrb[0].mxu0 %v813
      %v1181 = vpop.f32.mrb[0].mxu0
      %v1182 = vadd.f32 %v1085, %v1181
      %v1183 = vpop.f32.mrb[0].mxu0
      %v1184 = vpop.f32.mrb[0].mxu0
      %v1185 = vadd.f32 %v1088, %v1184
      %v1186 = vpop.f32.mrb[0].mxu0
      %1187 = vmatprep.mubr.bf16.mxu0 0
      %1188 = vmatmul.mubr.bf16.gmra.mrb[0].mxu0 %v816
      %v1189 = vpop.f32.mrb[0].mxu0
      %v1190 = vadd.f32 %v1093, %v1189
      %v1191 = vpop.f32.mrb[0].mxu0
      %v1192 = vpop.f32.mrb[0].mxu0
      %v1193 = vadd.f32 %v1096, %v1192
      %v1194 = vpop.f32.mrb[0].mxu0
      %1195 = vmatprep.mubr.bf16.mxu0 0
      %1196 = vmatmul.mubr.bf16.gmra.mrb[0].mxu0 %v819
      %v1197 = vpop.f32.mrb[0].mxu0
      %v1198 = vadd.f32 %v1101, %v1197
      %v1199 = vpop.f32.mrb[0].mxu0
      %v1200 = vpop.f32.mrb[0].mxu0
      %v1201 = vadd.f32 %v1104, %v1200
      %v1202 = vpop.f32.mrb[0].mxu0
      %1203 = vmatprep.mubr.bf16.mxu0 0
      %1204 = vmatmul.mubr.bf16.gmra.mrb[0].mxu0 %v822
      %v1205 = vpop.f32.mrb[0].mxu0
      %v1206 = vadd.f32 %v1109, %v1205
      %v1207 = vpop.f32.mrb[0].mxu0
      %v1208 = vpop.f32.mrb[0].mxu0
      %v1209 = vadd.f32 %v1112, %v1208
      %v1210 = vpop.f32.mrb[0].mxu0
      %1211 = vdwg.mxu0
      %v1212 = vmax.f32 %v1150, 0.0
      %v1213 = vmax.f32 %v1153, 0.0
      %v1214 = vmax.f32 %v1158, 0.0
      %v1215 = vmax.f32 %v1161, 0.0
      %v1216 = vmax.f32 %v1166, 0.0
      %v1217 = vmax.f32 %v1169, 0.0
      %v1218 = vmax.f32 %v1174, 0.0
      %v1219 = vmax.f32 %v1177, 0.0
      %v1220 = vmax.f32 %v1182, 0.0
      %v1221 = vmax.f32 %v1185, 0.0
      %v1222 = vmax.f32 %v1190, 0.0
      %v1223 = vmax.f32 %v1193, 0.0
      %v1224 = vmax.f32 %v1198, 0.0
      %v1225 = vmax.f32 %v1201, 0.0
      %v1226 = vmax.f32 %v1206, 0.0
      %v1227 = vmax.f32 %v1209, 0.0
      %v1228 = vpack.c.bf16 %v1213, %v1212
      %v1229 = vpack.c.bf16 %v1215, %v1214
      %v1230 = vpack.c.bf16 %v1217, %v1216
      %v1231 = vpack.c.bf16 %v1219, %v1218
      %v1232 = vpack.c.bf16 %v1221, %v1220
      %v1233 = vpack.c.bf16 %v1223, %v1222
      %v1234 = vpack.c.bf16 %v1225, %v1224
      %v1235 = vpack.c.bf16 %v1227, %v1226
      %v1236 = vld [vmem:[%s3] sm:$0xf]
      %v1237 = vld [vmem:[%s3 + $0x4] sm:$0xf]
      %v1238 = vld [vmem:[%s3 + $0x8] sm:$0xf]
      %v1239 = vld [vmem:[%s3 + $0xc] sm:$0xf]
      %v1240 = vld [vmem:[%s3 + $0x10] sm:$0xf]
      %v1241 = vld [vmem:[%s3 + $0x14] sm:$0xf]
      %v1242 = vld [vmem:[%s3 + $0x18] sm:$0xf]
      %v1243 = vld [vmem:[%s3 + $0x1c] sm:$0xf]
      %v1244 = vld [vmem:[%s3 + $0x20] sm:$0xf]
      %v1245 = vld [vmem:[%s3 + $0x24] sm:$0xf]
      %v1246 = vld [vmem:[%s3 + $0x28] sm:$0xf]
      %v1247 = vld [vmem:[%s3 + $0x2c] sm:$0xf]
      %v1248 = vld [vmem:[%s3 + $0x30] sm:$0xf]
      %v1249 = vld [vmem:[%s3 + $0x34] sm:$0xf]
      %v1250 = vld [vmem:[%s3 + $0x38] sm:$0xf]
      %v1251 = vld [vmem:[%s3 + $0x3c] sm:$0xf]
      %v1252 = vld [vmem:[%s4] sm:$0x1]
      %v1254 = vlaneseq
      %v1255 = vshrl.u32 %v1254, 7
      %v1256 = vsub.s32 0, %v1255
      %v1257 = vrot.slane %v1252, %v1256
      %v1275 = vunpack.c.l.b16 %v1236
      %v1276 = vunpack.c.l.b16 %v1237
      %v1277 = vunpack.c.l.b16 %v1238
      %v1278 = vunpack.c.l.b16 %v1239
      %v1279 = vunpack.c.l.b16 %v1240
      %v1280 = vunpack.c.l.b16 %v1241
      %v1281 = vunpack.c.l.b16 %v1242
      %v1282 = vunpack.c.l.b16 %v1243
      %v1283 = vunpack.c.l.b16 %v1244
      %v1284 = vunpack.c.l.b16 %v1245
      %v1285 = vunpack.c.l.b16 %v1246
      %v1286 = vunpack.c.l.b16 %v1247
      %v1287 = vunpack.c.l.b16 %v1248
      %v1288 = vunpack.c.l.b16 %v1249
      %v1289 = vunpack.c.l.b16 %v1250
      %v1290 = vunpack.c.l.b16 %v1251
      %v1291 = vpack.c.b16 %v1276, %v1275
      %v1292 = vpack.c.b16 %v1278, %v1277
      %v1293 = vpack.c.b16 %v1280, %v1279
      %v1294 = vpack.c.b16 %v1282, %v1281
      %v1295 = vpack.c.b16 %v1284, %v1283
      %v1296 = vpack.c.b16 %v1286, %v1285
      %v1297 = vpack.c.b16 %v1288, %v1287
      %v1298 = vpack.c.b16 %v1290, %v1289
      %1307 = vmatprep.subr.bf16.mxu0 0
      %1308 = vmatpush1.bf16.msra.mxu0 %v1291
      %1309 = vmatprep.subr.bf16.mxu0 0
      %1310 = vmatpush1.bf16.msra.mxu0 %v1292
      %1311 = vmatprep.subr.bf16.mxu0 0
      %1312 = vmatpush1.bf16.msra.mxu0 %v1293
      %1313 = vmatprep.subr.bf16.mxu0 0
      %1314 = vmatpush1.bf16.msra.mxu0 %v1294
      %1315 = vmatprep.subr.bf16.mxu0 0
      %1316 = vmatpush1.bf16.msra.mxu0 %v1295
      %1317 = vmatprep.subr.bf16.mxu0 0
      %1318 = vmatpush1.bf16.msra.mxu0 %v1296
      %1319 = vmatprep.subr.bf16.mxu0 0
      %1320 = vmatpush1.bf16.msra.mxu0 %v1297
      %1321 = vmatprep.subr.bf16.mxu0 0
      %1322 = vmatpush1.bf16.msra.mxu0 %v1298
      %1323 = vmatprep.subr.bf16.mxu0 0
      %1324 = vmatpush1.bf16.msra.mxu0 0
      %1325 = vmatprep.subr.bf16.mxu0 0
      %1326 = vmatpush1.bf16.msra.mxu0 0
      %1327 = vmatprep.subr.bf16.mxu0 0
      %1328 = vmatpush1.bf16.msra.mxu0 0
      %1329 = vmatprep.subr.bf16.mxu0 0
      %1330 = vmatpush1.bf16.msra.mxu0 0
      %1331 = vmatprep.subr.bf16.mxu0 0
      %1332 = vmatpush1.bf16.msra.mxu0 0
      %1333 = vmatprep.subr.bf16.mxu0 0
      %1334 = vmatpush1.bf16.msra.mxu0 0
      %1335 = vmatprep.subr.bf16.mxu0 0
      %1336 = vmatpush1.bf16.msra.mxu0 0
      %1337 = vmatprep.subr.bf16.mxu0 0
      %1338 = vmatpush1.bf16.msra.mxu0 0
      %1339 = vmatprep.mubr.bf16.mxu0 0
      %1340 = vmatmul.mubr.bf16.gmra.mrb[0].mxu0 %v1228
      %v1341 = vpop.f32.mrb[0].mxu0
      %v1342 = vadd.f32 %v1257, %v1341
      %v1343 = vpop.f32.mrb[0].mxu0
      %v1344 = vpop.f32.mrb[0].mxu0
      %v1345 = vadd.f32 %v1257, %v1344
      %v1346 = vpop.f32.mrb[0].mxu0
      %1347 = vmatprep.mubr.bf16.mxu0 0
      %1348 = vmatmul.mubr.bf16.gmra.mrb[0].mxu0 %v1229
      %v1349 = vpop.f32.mrb[0].mxu0
      %v1350 = vadd.f32 %v1257, %v1349
      %v1351 = vpop.f32.mrb[0].mxu0
      %v1352 = vpop.f32.mrb[0].mxu0
      %v1353 = vadd.f32 %v1257, %v1352
      %v1354 = vpop.f32.mrb[0].mxu0
      %1355 = vmatprep.mubr.bf16.mxu0 0
      %1356 = vmatmul.mubr.bf16.gmra.mrb[0].mxu0 %v1230
      %v1357 = vpop.f32.mrb[0].mxu0
      %v1358 = vadd.f32 %v1257, %v1357
      %v1359 = vpop.f32.mrb[0].mxu0
      %v1360 = vpop.f32.mrb[0].mxu0
      %v1361 = vadd.f32 %v1257, %v1360
      %v1362 = vpop.f32.mrb[0].mxu0
      %1363 = vmatprep.mubr.bf16.mxu0 0
      %1364 = vmatmul.mubr.bf16.gmra.mrb[0].mxu0 %v1231
      %v1365 = vpop.f32.mrb[0].mxu0
      %v1366 = vadd.f32 %v1257, %v1365
      %v1367 = vpop.f32.mrb[0].mxu0
      %v1368 = vpop.f32.mrb[0].mxu0
      %v1369 = vadd.f32 %v1257, %v1368
      %v1370 = vpop.f32.mrb[0].mxu0
      %1371 = vmatprep.mubr.bf16.mxu0 0
      %1372 = vmatmul.mubr.bf16.gmra.mrb[0].mxu0 %v1232
      %v1373 = vpop.f32.mrb[0].mxu0
      %v1374 = vadd.f32 %v1257, %v1373
      %v1375 = vpop.f32.mrb[0].mxu0
      %v1376 = vpop.f32.mrb[0].mxu0
      %v1377 = vadd.f32 %v1257, %v1376
      %v1378 = vpop.f32.mrb[0].mxu0
      %1379 = vmatprep.mubr.bf16.mxu0 0
      %1380 = vmatmul.mubr.bf16.gmra.mrb[0].mxu0 %v1233
      %v1381 = vpop.f32.mrb[0].mxu0
      %v1382 = vadd.f32 %v1257, %v1381
      %v1383 = vpop.f32.mrb[0].mxu0
      %v1384 = vpop.f32.mrb[0].mxu0
      %v1385 = vadd.f32 %v1257, %v1384
      %v1386 = vpop.f32.mrb[0].mxu0
      %1387 = vmatprep.mubr.bf16.mxu0 0
      %1388 = vmatmul.mubr.bf16.gmra.mrb[0].mxu0 %v1234
      %v1389 = vpop.f32.mrb[0].mxu0
      %v1390 = vadd.f32 %v1257, %v1389
      %v1391 = vpop.f32.mrb[0].mxu0
      %v1392 = vpop.f32.mrb[0].mxu0
      %v1393 = vadd.f32 %v1257, %v1392
      %v1394 = vpop.f32.mrb[0].mxu0
      %1395 = vmatprep.mubr.bf16.mxu0 0
      %1396 = vmatmul.mubr.bf16.gmra.mrb[0].mxu0 %v1235
      %v1397 = vpop.f32.mrb[0].mxu0
      %v1398 = vadd.f32 %v1257, %v1397
      %v1399 = vpop.f32.mrb[0].mxu0
      %v1400 = vpop.f32.mrb[0].mxu0
      %v1401 = vadd.f32 %v1257, %v1400
      %v1402 = vpop.f32.mrb[0].mxu0
      %1403 = vdwg.mxu0
      %1404 = vmax.xlane.f32.xlu0 %v1342
      %v1405 = vpop.xlane.xlu0 %1404
      %1406 = vmax.xlane.f32.xlu0 %v1345
      %v1407 = vpop.xlane.xlu0 %1406
      %1408 = vmax.xlane.f32.xlu0 %v1350
      %v1409 = vpop.xlane.xlu0 %1408
      %1410 = vmax.xlane.f32.xlu0 %v1353
      %v1411 = vpop.xlane.xlu0 %1410
      %1412 = vmax.xlane.f32.xlu0 %v1358
      %v1413 = vpop.xlane.xlu0 %1412
      %1414 = vmax.xlane.f32.xlu0 %v1361
      %v1415 = vpop.xlane.xlu0 %1414
      %1416 = vmax.xlane.f32.xlu0 %v1366
      %v1417 = vpop.xlane.xlu0 %1416
      %1418 = vmax.xlane.f32.xlu0 %v1369
      %v1419 = vpop.xlane.xlu0 %1418
      %1420 = vmax.xlane.f32.xlu0 %v1374
      %v1421 = vpop.xlane.xlu0 %1420
      %1422 = vmax.xlane.f32.xlu0 %v1377
      %v1423 = vpop.xlane.xlu0 %1422
      %1424 = vmax.xlane.f32.xlu0 %v1382
      %v1425 = vpop.xlane.xlu0 %1424
      %1426 = vmax.xlane.f32.xlu0 %v1385
      %v1427 = vpop.xlane.xlu0 %1426
      %1428 = vmax.xlane.f32.xlu0 %v1390
      %v1429 = vpop.xlane.xlu0 %1428
      %1430 = vmax.xlane.f32.xlu0 %v1393
      %v1431 = vpop.xlane.xlu0 %1430
      %1432 = vmax.xlane.f32.xlu0 %v1398
      %v1433 = vpop.xlane.xlu0 %1432
      %1434 = vmax.xlane.f32.xlu0 %v1401
      %v1435 = vpop.xlane.xlu0 %1434
      %v1436 = vsub.f32 %v1342, %v1405
      %v1437 = vsub.f32 %v1345, %v1407
      %v1438 = vsub.f32 %v1350, %v1409
      %v1439 = vsub.f32 %v1353, %v1411
      %v1440 = vsub.f32 %v1358, %v1413
      %v1441 = vsub.f32 %v1361, %v1415
      %v1442 = vsub.f32 %v1366, %v1417
      %v1443 = vsub.f32 %v1369, %v1419
      %v1444 = vsub.f32 %v1374, %v1421
      %v1445 = vsub.f32 %v1377, %v1423
      %v1446 = vsub.f32 %v1382, %v1425
      %v1447 = vsub.f32 %v1385, %v1427
      %v1448 = vsub.f32 %v1390, %v1429
      %v1449 = vsub.f32 %v1393, %v1431
      %v1450 = vsub.f32 %v1398, %v1433
      %v1451 = vsub.f32 %v1401, %v1435
      %v1452 = vmul.f32 %v1436, 1.442695
      %v1453 = vpow.pop %v1452
      %v1454 = vmul.f32 %v1437, 1.442695
      %v1455 = vpow.pop %v1454
      %v1456 = vmul.f32 %v1438, 1.442695
      %v1457 = vpow.pop %v1456
      %v1458 = vmul.f32 %v1439, 1.442695
      %v1459 = vpow.pop %v1458
      %v1460 = vmul.f32 %v1440, 1.442695
      %v1461 = vpow.pop %v1460
      %v1462 = vmul.f32 %v1441, 1.442695
      %v1463 = vpow.pop %v1462
      %v1464 = vmul.f32 %v1442, 1.442695
      %v1465 = vpow.pop %v1464
      %v1466 = vmul.f32 %v1443, 1.442695
      %v1467 = vpow.pop %v1466
      %v1468 = vmul.f32 %v1444, 1.442695
      %v1469 = vpow.pop %v1468
      %v1470 = vmul.f32 %v1445, 1.442695
      %v1471 = vpow.pop %v1470
      %v1472 = vmul.f32 %v1446, 1.442695
      %v1473 = vpow.pop %v1472
      %v1474 = vmul.f32 %v1447, 1.442695
      %v1475 = vpow.pop %v1474
      %v1476 = vmul.f32 %v1448, 1.442695
      %v1477 = vpow.pop %v1476
      %v1478 = vmul.f32 %v1449, 1.442695
      %v1479 = vpow.pop %v1478
      %v1480 = vmul.f32 %v1450, 1.442695
      %v1481 = vpow.pop %v1480
      %v1482 = vmul.f32 %v1451, 1.442695
      %v1483 = vpow.pop %v1482
      %1484 = vadd.xlane.f32.xlu0 %v1453
      %v1485 = vpop.xlane.xlu0 %1484
      %1486 = vadd.xlane.f32.xlu0 %v1455
      %v1487 = vpop.xlane.xlu0 %1486
      %1488 = vadd.xlane.f32.xlu0 %v1457
      %v1489 = vpop.xlane.xlu0 %1488
      %1490 = vadd.xlane.f32.xlu0 %v1459
      %v1491 = vpop.xlane.xlu0 %1490
      %1492 = vadd.xlane.f32.xlu0 %v1461
      %v1493 = vpop.xlane.xlu0 %1492
      %1494 = vadd.xlane.f32.xlu0 %v1463
      %v1495 = vpop.xlane.xlu0 %1494
      %1496 = vadd.xlane.f32.xlu0 %v1465
      %v1497 = vpop.xlane.xlu0 %1496
      %1498 = vadd.xlane.f32.xlu0 %v1467
      %v1499 = vpop.xlane.xlu0 %1498
      %1500 = vadd.xlane.f32.xlu0 %v1469
      %v1501 = vpop.xlane.xlu0 %1500
      %1502 = vadd.xlane.f32.xlu0 %v1471
      %v1503 = vpop.xlane.xlu0 %1502
      %1504 = vadd.xlane.f32.xlu0 %v1473
      %v1505 = vpop.xlane.xlu0 %1504
      %1506 = vadd.xlane.f32.xlu0 %v1475
      %v1507 = vpop.xlane.xlu0 %1506
      %1508 = vadd.xlane.f32.xlu0 %v1477
      %v1509 = vpop.xlane.xlu0 %1508
      %1510 = vadd.xlane.f32.xlu0 %v1479
      %v1511 = vpop.xlane.xlu0 %1510
      %1512 = vadd.xlane.f32.xlu0 %v1481
      %v1513 = vpop.xlane.xlu0 %1512
      %1514 = vadd.xlane.f32.xlu0 %v1483
      %v1515 = vpop.xlane.xlu0 %1514
      %v1516 = vrcp.pop %v1485
      %v1517 = vrcp.pop %v1487
      %v1518 = vrcp.pop %v1489
      %v1519 = vrcp.pop %v1491
      %v1520 = vrcp.pop %v1493
      %v1521 = vrcp.pop %v1495
      %v1522 = vrcp.pop %v1497
      %v1523 = vrcp.pop %v1499
      %v1524 = vrcp.pop %v1501
      %v1525 = vrcp.pop %v1503
      %v1526 = vrcp.pop %v1505
      %v1527 = vrcp.pop %v1507
      %v1528 = vrcp.pop %v1509
      %v1529 = vrcp.pop %v1511
      %v1530 = vrcp.pop %v1513
      %v1531 = vrcp.pop %v1515
      %v1532 = vmul.f32 %v1485, %v1516
      %v1533 = vmul.f32 %v1487, %v1517
      %v1534 = vmul.f32 %v1489, %v1518
      %v1535 = vmul.f32 %v1491, %v1519
      %v1536 = vmul.f32 %v1493, %v1520
      %v1537 = vmul.f32 %v1495, %v1521
      %v1538 = vmul.f32 %v1497, %v1522
      %v1539 = vmul.f32 %v1499, %v1523
      %v1540 = vmul.f32 %v1501, %v1524
      %v1541 = vmul.f32 %v1503, %v1525
      %v1542 = vmul.f32 %v1505, %v1526
      %v1543 = vmul.f32 %v1507, %v1527
      %v1544 = vmul.f32 %v1509, %v1528
      %v1545 = vmul.f32 %v1511, %v1529
      %v1546 = vmul.f32 %v1513, %v1530
      %v1547 = vmul.f32 %v1515, %v1531
      %v1548 = vsub.f32 2.0, %v1532
      %v1549 = vsub.f32 2.0, %v1533
      %v1550 = vsub.f32 2.0, %v1534
      %v1551 = vsub.f32 2.0, %v1535
      %v1552 = vsub.f32 2.0, %v1536
      %v1553 = vsub.f32 2.0, %v1537
      %v1554 = vsub.f32 2.0, %v1538
      %v1555 = vsub.f32 2.0, %v1539
      %v1556 = vsub.f32 2.0, %v1540
      %v1557 = vsub.f32 2.0, %v1541
      %v1558 = vsub.f32 2.0, %v1542
      %v1559 = vsub.f32 2.0, %v1543
      %v1560 = vsub.f32 2.0, %v1544
      %v1561 = vsub.f32 2.0, %v1545
      %v1562 = vsub.f32 2.0, %v1546
      %v1563 = vsub.f32 2.0, %v1547
      %v1564 = vmul.f32 %v1516, %v1548
      %v1565 = vmul.f32 %v1517, %v1549
      %v1566 = vmul.f32 %v1518, %v1550
      %v1567 = vmul.f32 %v1519, %v1551
      %v1568 = vmul.f32 %v1520, %v1552
      %v1569 = vmul.f32 %v1521, %v1553
      %v1570 = vmul.f32 %v1522, %v1554
      %v1571 = vmul.f32 %v1523, %v1555
      %v1572 = vmul.f32 %v1524, %v1556
      %v1573 = vmul.f32 %v1525, %v1557
      %v1574 = vmul.f32 %v1526, %v1558
      %v1575 = vmul.f32 %v1527, %v1559
      %v1576 = vmul.f32 %v1528, %v1560
      %v1577 = vmul.f32 %v1529, %v1561
      %v1578 = vmul.f32 %v1530, %v1562
      %v1579 = vmul.f32 %v1531, %v1563
      %v1580 = vmul.f32 %v1453, %v1564
      %v1581 = vmul.f32 %v1455, %v1565
      %v1582 = vmul.f32 %v1457, %v1566
      %v1583 = vmul.f32 %v1459, %v1567
      %v1584 = vmul.f32 %v1461, %v1568
      %v1585 = vmul.f32 %v1463, %v1569
      %v1586 = vmul.f32 %v1465, %v1570
      %v1587 = vmul.f32 %v1467, %v1571
      %v1588 = vmul.f32 %v1469, %v1572
      %v1589 = vmul.f32 %v1471, %v1573
      %v1590 = vmul.f32 %v1473, %v1574
      %v1591 = vmul.f32 %v1475, %v1575
      %v1592 = vmul.f32 %v1477, %v1576
      %v1593 = vmul.f32 %v1479, %v1577
      %v1594 = vmul.f32 %v1481, %v1578
      %v1595 = vmul.f32 %v1483, %v1579
      %1596 = vst [vmem:[%s229] sm:$0xff] %v1580
      %1597 = vst [vmem:[%s229 + $0x8] sm:$0xff] %v1581
      %1598 = vst [vmem:[%s229 + $0x10] sm:$0xff] %v1582
      %1599 = vst [vmem:[%s229 + $0x18] sm:$0xff] %v1583
      %1600 = vst [vmem:[%s229 + $0x20] sm:$0xff] %v1584
      %1601 = vst [vmem:[%s229 + $0x28] sm:$0xff] %v1585
      %1602 = vst [vmem:[%s229 + $0x30] sm:$0xff] %v1586
      %1603 = vst [vmem:[%s229 + $0x38] sm:$0xff] %v1587
      %1604 = vst [vmem:[%s229 + $0x40] sm:$0xff] %v1588
      %1605 = vst [vmem:[%s229 + $0x48] sm:$0xff] %v1589
      %1606 = vst [vmem:[%s229 + $0x50] sm:$0xff] %v1590
      %1607 = vst [vmem:[%s229 + $0x58] sm:$0xff] %v1591
      %1608 = vst [vmem:[%s229 + $0x60] sm:$0xff] %v1592
      %1609 = vst [vmem:[%s229 + $0x68] sm:$0xff] %v1593
      %1610 = vst [vmem:[%s229 + $0x70] sm:$0xff] %v1594
      %1611 = vst [vmem:[%s229 + $0x78] sm:$0xff] %v1595
      %s1612 = smul.u32 16, %s16
      %p1613 = scmp.lt.s32.totalorder %s1612, 31
      %s1614 = scalar_select %p1613, %s1612, 31
      %s1615 = smul.addr %s1614, 8
      %s1616 = scalar_lea.vmem %s5, %s1615
      // Predicated region
      $region41: #{classifier_forward.1} parent=39 // pred_check
        %p1617 = pneg %p144
      $region42: #{classifier_forward.1} parent=39 // pred_check_branch
        %1619 = sbr.rel (%p1617) target = $region44
      $region43: #{classifier_forward.1} parent=39 // pred_region
        %s1620 = smul.u32 16, %s16
      $region44: #{classifier_forward.1} parent=39 // pred_fallthru
        _
    $region40: #{classifier_forward.1} parent=5 // pred_fallthru
      _
    %p1621 = scmp.le.s32.totalorder 2, %s11
    // Predicated region
    $region45: #{classifier_forward.1} parent=5 // pred_check
      %p1622 = pneg %p1621
    $region46: #{classifier_forward.1} parent=5 // pred_check_branch
      %1624 = sbr.rel (%p1622) target = $region48
    $region47: #{classifier_forward.1} parent=5 // pred_region
      %s1625 = ssub.s32 %s11, 2
      // Predicated region
      $region49: #{classifier_forward.1} parent=47 // pred_check
        %p1626 = pneg %p150
      $region50: #{classifier_forward.1} parent=47 // pred_check_branch
        %1628 = sbr.rel (%p1626) target = $region52
      $region51: #{classifier_forward.1} parent=47 // pred_region
        %s1629 = smul.u32 16, %s17
        %p1630 = scmp.lt.s32.totalorder %s1629, 31
        %s1631 = scalar_select %p1630, %s1629, 31
        %s1632 = smul.addr %s1631, 8
        %s1633 = scalar_lea.vmem %s5, %s1632
      $region52: #{classifier_forward.1} parent=47 // pred_fallthru
        _
    $region48: #{classifier_forward.1} parent=5 // pred_fallthru
      _
  $region6: #{classifier_forward.1} parent=0 // loop_footer
    %s15 = sadd.s32 1, %s11
  $region7: #{classifier_forward.1} parent=0 // loop_footer_branch
    %10 = sbr.rel target = $region3
  $region8: #{classifier_forward.1} parent=0 // loop_exit
    _

</llo_original>
